<compile_context>
chip_gen: v5e
topology: v5e:2x2
jax: 0.10.0
libtpu: 0.0.40
codegen_flags: <defaults>
</compile_context>

<pallas_src>
import functools

import jax
import jax.numpy as jnp
from jax import lax
from jax.experimental import pallas as pl
from jax.experimental.pallas import tpu as pltpu

_SUBLANE = 8
_LANE = 128


def _round_up(x, m):
    return ((x + m - 1) // m) * m


def lstm_classifier_kernel(x_ref, wih_ref, whh_ref, b_ref, wlin_ref, blin_ref,
                           out_ref, *, seq_len):
    """Single-invocation kernel; whole sequence resident in VMEM.

    x_ref   : (S*Bp, E)   time-major embedded input, flattened over (t, b)
    wih_ref : (E, 4*Hp)   input->gate weights, gate order (i, f, o, g)
    whh_ref : (Hp, 4*Hp)  hidden->gate weights, gate order (i, f, o, g)
    b_ref   : (1, 4*Hp)   combined bias b_ih + b_hh (reordered / padded)
    wlin_ref: (Hp, Op)    classifier weights
    blin_ref: (1, Op)     classifier bias
    out_ref : (Bp, Op)    logits (padded); valid region is [:B, :O]
    """
    Bp = out_ref.shape[0]
    Hp = whh_ref.shape[0]

    # Hoisted input projection: one batched MXU matmul for every timestep
    # (no recurrent dependence), instead of one tiny matmul per step on the
    # serial critical path.
    gate_x = (jnp.dot(x_ref[...], wih_ref[...],
                      preferred_element_type=jnp.float32)
              + b_ref[...])                                   # (S*Bp, 4Hp)

    whh = whh_ref[...]                                        # (Hp, 4Hp)

    h = jnp.zeros((Bp, Hp), jnp.float32)
    c = jnp.zeros((Bp, Hp), jnp.float32)

    # Fully unrolled recurrence (seq_len is small & static): no grid-step
    # overhead; slices below are static and sublane/lane aligned.
    for t in range(seq_len):
        gates = (gate_x[t * Bp:(t + 1) * Bp, :]
                 + jnp.dot(h, whh, preferred_element_type=jnp.float32))
        # Gate layout is (i, f, o, g): sigmoid gates are contiguous, so one
        # sigmoid pass over 3*Hp lanes + one tanh over Hp lanes.
        sig = jax.nn.sigmoid(gates[:, 0:3 * Hp])
        i_g = sig[:, 0 * Hp:1 * Hp]
        f_g = sig[:, 1 * Hp:2 * Hp]
        o_g = sig[:, 2 * Hp:3 * Hp]
        g_g = jnp.tanh(gates[:, 3 * Hp:4 * Hp])
        c = f_g * c + i_g * g_g
        h = o_g * jnp.tanh(c)

    logits = (jnp.dot(h, wlin_ref[...], preferred_element_type=jnp.float32)
              + blin_ref[...])
    out_ref[...] = logits.astype(out_ref.dtype)


def _reorder_and_pad_gates(w, H, Hp):
    """Reorder PyTorch gate blocks (i,f,g,o) -> (i,f,o,g); pad each block's
    leading (gate) axis from H to Hp with zeros."""
    blocks = [w[0 * H:1 * H], w[1 * H:2 * H], w[3 * H:4 * H], w[2 * H:3 * H]]
    pad_width = [(0, Hp - H)] + [(0, 0)] * (w.ndim - 1)
    return jnp.concatenate([jnp.pad(b, pad_width) for b in blocks], axis=0)


def lstm_classifier_forward(sequence, params, *, emb_dim, hidden_dim,
                            output_size):
    """sequence: (batch, seq_len) int32 token indices -> (batch, output_size)."""
    batch, seq_len = sequence.shape
    H = hidden_dim
    Bp = _round_up(batch, _SUBLANE)
    Hp = _round_up(hidden_dim, _LANE)
    Op = _round_up(output_size, _LANE)

    # --- glue: embedding lookup, time-major permute, padding, flattening ---
    # TODO(synk): embedding gather stays in JAX (jnp.take); only the LSTM +
    # classifier math runs in the Pallas kernel.
    emb = jnp.take(params["embedding"], sequence, axis=0)      # (B, S, E)
    x = jnp.transpose(emb, (1, 0, 2)).astype(jnp.float32)      # (S, B, E)
    x = jnp.pad(x, ((0, 0), (0, Bp - batch), (0, 0)))          # (S, Bp, E)
    x_flat = x.reshape(seq_len * Bp, emb_dim)                  # (S*Bp, E)

    # --- weight prep: gate reorder (i,f,o,g), pad H->Hp / O->Op, transpose ---
    wih = _reorder_and_pad_gates(params["w_ih"], H, Hp)        # (4Hp, E)
    whh = _reorder_and_pad_gates(params["w_hh"], H, Hp)        # (4Hp, H)
    whh = jnp.pad(whh, ((0, 0), (0, Hp - H)))                  # (4Hp, Hp)
    bias = _reorder_and_pad_gates(params["b_ih"] + params["b_hh"], H, Hp)
    bias = bias.reshape(1, 4 * Hp)

    wih_t = wih.T                                              # (E, 4Hp)
    whh_t = whh.T                                              # (Hp, 4Hp)

    wlin = jnp.pad(params["w_lin"],
                   ((0, Op - output_size), (0, Hp - H)))       # (Op, Hp)
    wlin_t = wlin.T                                            # (Hp, Op)
    blin = jnp.pad(params["b_lin"], (0, Op - output_size)).reshape(1, Op)

    # --- cost estimate (advisory, helps XLA schedule around the call) ---
    flops = (2 * seq_len * Bp * emb_dim * 4 * Hp     # hoisted input proj
             + 2 * seq_len * Bp * Hp * 4 * Hp        # recurrent matmuls
             + 2 * Bp * Hp * Op)                     # classifier
    transcendentals = seq_len * Bp * (4 * Hp + Hp)   # sigmoid/tanh + tanh(c)
    bytes_accessed = 4 * (x_flat.size + wih_t.size + whh_t.size + bias.size
                          + wlin_t.size + blin.size + Bp * Op)

    vmem_spec = pl.BlockSpec(memory_space=pltpu.MemorySpace.VMEM)
    kernel = pl.pallas_call(
        functools.partial(lstm_classifier_kernel, seq_len=seq_len),
        out_shape=jax.ShapeDtypeStruct((Bp, Op), jnp.float32),
        in_specs=[vmem_spec] * 6,
        out_specs=vmem_spec,
        cost_estimate=pl.CostEstimate(flops=flops,
                                      transcendentals=transcendentals,
                                      bytes_accessed=bytes_accessed),
        compiler_params=pltpu.CompilerParams(
            vmem_limit_bytes=16 * 1024 * 1024),
    )
    out_pad = kernel(x_flat, wih_t, whh_t, bias, wlin_t, blin)
    return out_pad[:batch, :output_size]


def reference_forward(sequence, params, *, hidden_dim):
    """Pure-JAX reference (lax.scan LSTM, original gate order, no padding)."""
    emb = jnp.take(params["embedding"], sequence, axis=0)
    x = jnp.transpose(emb, (1, 0, 2)).astype(jnp.float32)      # (S, B, E)
    B = x.shape[1]
    H = hidden_dim

    def step(carry, x_t):
        h, c = carry
        gates = (x_t @ params["w_ih"].T + params["b_ih"]
                 + h @ params["w_hh"].T + params["b_hh"])
        i = jax.nn.sigmoid(gates[:, 0 * H:1 * H])
        f = jax.nn.sigmoid(gates[:, 1 * H:2 * H])
        g = jnp.tanh(gates[:, 2 * H:3 * H])
        o = jax.nn.sigmoid(gates[:, 3 * H:4 * H])
        c = f * c + i * g
        h = o * jnp.tanh(c)
        return (h, c), None

    h0 = jnp.zeros((B, H), jnp.float32)
    c0 = jnp.zeros((B, H), jnp.float32)
    (h, _), _ = lax.scan(step, (h0, c0), x)
    return h @ params["w_lin"].T + params["b_lin"]


if __name__ == "__main__":
    # hparams (small, consistent with the module)
    vocab_size = 50
    emb_dim = 16
    hidden_dim = 32
    output_size = 8
    batch_size = 4
    seq_len = 8

    key = jax.random.PRNGKey(0)
    ks = jax.random.split(key, 8)
    scale = 0.1
    params = {
        "embedding": scale * jax.random.normal(ks[0], (vocab_size, emb_dim), jnp.float32),
        "w_ih": scale * jax.random.normal(ks[1], (4 * hidden_dim, emb_dim), jnp.float32),
        "w_hh": scale * jax.random.normal(ks[2], (4 * hidden_dim, hidden_dim), jnp.float32),
        "b_ih": scale * jax.random.normal(ks[3], (4 * hidden_dim,), jnp.float32),
        "b_hh": scale * jax.random.normal(ks[4], (4 * hidden_dim,), jnp.float32),
        "w_lin": scale * jax.random.normal(ks[5], (output_size, hidden_dim), jnp.float32),
        "b_lin": scale * jax.random.normal(ks[6], (output_size,), jnp.float32),
    }

    sequence = jax.random.randint(ks[7], (batch_size, seq_len), 0, vocab_size,
                                  dtype=jnp.int32)

    out = lstm_classifier_forward(sequence, params, emb_dim=emb_dim,
                                  hidden_dim=hidden_dim,
                                  output_size=output_size)
    out = jax.block_until_ready(out)

    ref = reference_forward(sequence, params, hidden_dim=hidden_dim)
    assert out.shape == (batch_size, output_size)
    assert jnp.allclose(out, ref, atol=1e-4, rtol=1e-4), "mismatch vs reference"

    print("KERNEL_OK")
</pallas_src>

<mosaic_0001>
module attributes {stable_mosaic.version = 11 : i64} {
  func.func @lstm_classifier_kernel(%arg0: memref<64x16xf32, #tpu.memory_space<vmem>>, %arg1: memref<16x512xf32, #tpu.memory_space<vmem>>, %arg2: memref<128x512xf32, #tpu.memory_space<vmem>>, %arg3: memref<1x512xf32, #tpu.memory_space<vmem>>, %arg4: memref<128x128xf32, #tpu.memory_space<vmem>>, %arg5: memref<1x128xf32, #tpu.memory_space<vmem>>, %arg6: memref<8x128xf32, #tpu.memory_space<vmem>>) attributes {dimension_semantics = [], scalar_prefetch = 0 : i64, scratch_operands = 0 : i64, tpu.core_type = #tpu.core_type<tc>} {
    %c0 = arith.constant 0 : index
    %c0_0 = arith.constant 0 : index
    %0 = vector.load %arg0[%c0, %c0_0] : memref<64x16xf32, #tpu.memory_space<vmem>>, vector<64x16xf32>
    %c0_1 = arith.constant 0 : index
    %c0_2 = arith.constant 0 : index
    %1 = vector.load %arg1[%c0_1, %c0_2] : memref<16x512xf32, #tpu.memory_space<vmem>>, vector<16x512xf32>
    %cst = arith.constant dense<0.000000e+00> : vector<64x512xf32>
    %2 = tpu.matmul %0, %1, %cst {dimension_numbers = #tpu.dot_dimension_numbers<[1], [0], [0], [1], [0, 0, 1, 1], [], []>} : vector<64x16xf32>, vector<16x512xf32>, vector<64x512xf32> -> vector<64x512xf32>
    %c0_3 = arith.constant 0 : index
    %c0_4 = arith.constant 0 : index
    %3 = vector.load %arg3[%c0_3, %c0_4] : memref<1x512xf32, #tpu.memory_space<vmem>>, vector<1x512xf32>
    %4 = vector.broadcast %3 : vector<1x512xf32> to vector<64x512xf32>
    %5 = arith.addf %2, %4 : vector<64x512xf32>
    %c0_5 = arith.constant 0 : index
    %c0_6 = arith.constant 0 : index
    %6 = vector.load %arg2[%c0_5, %c0_6] : memref<128x512xf32, #tpu.memory_space<vmem>>, vector<128x512xf32>
    %cst_7 = arith.constant 0.000000e+00 : f32
    %7 = vector.broadcast %cst_7 : f32 to vector<8x128xf32>
    %cst_8 = arith.constant 0.000000e+00 : f32
    %8 = vector.broadcast %cst_8 : f32 to vector<8x128xf32>
    %9 = vector.extract_strided_slice %5 {offsets = [0, 0], sizes = [8, 512], strides = [1, 1]} : vector<64x512xf32> to vector<8x512xf32>
    %cst_9 = arith.constant dense<0.000000e+00> : vector<8x512xf32>
    %10 = tpu.matmul %7, %6, %cst_9 {dimension_numbers = #tpu.dot_dimension_numbers<[1], [0], [0], [1], [0, 0, 1, 1], [], []>} : vector<8x128xf32>, vector<128x512xf32>, vector<8x512xf32> -> vector<8x512xf32>
    %11 = arith.addf %9, %10 : vector<8x512xf32>
    %12 = vector.extract_strided_slice %11 {offsets = [0, 0], sizes = [8, 384], strides = [1, 1]} : vector<8x512xf32> to vector<8x384xf32>
    %13 = arith.negf %12 : vector<8x384xf32>
    %14 = math.exp %13 : vector<8x384xf32>
    %cst_10 = arith.constant 1.000000e+00 : f32
    %15 = vector.broadcast %cst_10 : f32 to vector<8x384xf32>
    %16 = arith.addf %15, %14 : vector<8x384xf32>
    %17 = arith.divf %15, %16 : vector<8x384xf32>
    %18 = vector.extract_strided_slice %17 {offsets = [0, 0], sizes = [8, 128], strides = [1, 1]} : vector<8x384xf32> to vector<8x128xf32>
    %19 = vector.extract_strided_slice %17 {offsets = [0, 128], sizes = [8, 128], strides = [1, 1]} : vector<8x384xf32> to vector<8x128xf32>
    %20 = vector.extract_strided_slice %17 {offsets = [0, 256], sizes = [8, 128], strides = [1, 1]} : vector<8x384xf32> to vector<8x128xf32>
    %21 = vector.extract_strided_slice %11 {offsets = [0, 384], sizes = [8, 128], strides = [1, 1]} : vector<8x512xf32> to vector<8x128xf32>
    %22 = math.tanh %21 : vector<8x128xf32>
    %23 = arith.mulf %19, %8 : vector<8x128xf32>
    %24 = arith.mulf %18, %22 : vector<8x128xf32>
    %25 = arith.addf %23, %24 : vector<8x128xf32>
    %26 = math.tanh %25 : vector<8x128xf32>
    %27 = arith.mulf %20, %26 : vector<8x128xf32>
    %28 = vector.extract_strided_slice %5 {offsets = [8, 0], sizes = [8, 512], strides = [1, 1]} : vector<64x512xf32> to vector<8x512xf32>
    %cst_11 = arith.constant dense<0.000000e+00> : vector<8x512xf32>
    %29 = tpu.matmul %27, %6, %cst_11 {dimension_numbers = #tpu.dot_dimension_numbers<[1], [0], [0], [1], [0, 0, 1, 1], [], []>} : vector<8x128xf32>, vector<128x512xf32>, vector<8x512xf32> -> vector<8x512xf32>
    %30 = arith.addf %28, %29 : vector<8x512xf32>
    %31 = vector.extract_strided_slice %30 {offsets = [0, 0], sizes = [8, 384], strides = [1, 1]} : vector<8x512xf32> to vector<8x384xf32>
    %32 = arith.negf %31 : vector<8x384xf32>
    %33 = math.exp %32 : vector<8x384xf32>
    %cst_12 = arith.constant 1.000000e+00 : f32
    %34 = vector.broadcast %cst_12 : f32 to vector<8x384xf32>
    %35 = arith.addf %34, %33 : vector<8x384xf32>
    %36 = arith.divf %34, %35 : vector<8x384xf32>
    %37 = vector.extract_strided_slice %36 {offsets = [0, 0], sizes = [8, 128], strides = [1, 1]} : vector<8x384xf32> to vector<8x128xf32>
    %38 = vector.extract_strided_slice %36 {offsets = [0, 128], sizes = [8, 128], strides = [1, 1]} : vector<8x384xf32> to vector<8x128xf32>
    %39 = vector.extract_strided_slice %36 {offsets = [0, 256], sizes = [8, 128], strides = [1, 1]} : vector<8x384xf32> to vector<8x128xf32>
    %40 = vector.extract_strided_slice %30 {offsets = [0, 384], sizes = [8, 128], strides = [1, 1]} : vector<8x512xf32> to vector<8x128xf32>
    %41 = math.tanh %40 : vector<8x128xf32>
    %42 = arith.mulf %38, %25 : vector<8x128xf32>
    %43 = arith.mulf %37, %41 : vector<8x128xf32>
    %44 = arith.addf %42, %43 : vector<8x128xf32>
    %45 = math.tanh %44 : vector<8x128xf32>
    %46 = arith.mulf %39, %45 : vector<8x128xf32>
    %47 = vector.extract_strided_slice %5 {offsets = [16, 0], sizes = [8, 512], strides = [1, 1]} : vector<64x512xf32> to vector<8x512xf32>
    %cst_13 = arith.constant dense<0.000000e+00> : vector<8x512xf32>
    %48 = tpu.matmul %46, %6, %cst_13 {dimension_numbers = #tpu.dot_dimension_numbers<[1], [0], [0], [1], [0, 0, 1, 1], [], []>} : vector<8x128xf32>, vector<128x512xf32>, vector<8x512xf32> -> vector<8x512xf32>
    %49 = arith.addf %47, %48 : vector<8x512xf32>
    %50 = vector.extract_strided_slice %49 {offsets = [0, 0], sizes = [8, 384], strides = [1, 1]} : vector<8x512xf32> to vector<8x384xf32>
    %51 = arith.negf %50 : vector<8x384xf32>
    %52 = math.exp %51 : vector<8x384xf32>
    %cst_14 = arith.constant 1.000000e+00 : f32
    %53 = vector.broadcast %cst_14 : f32 to vector<8x384xf32>
    %54 = arith.addf %53, %52 : vector<8x384xf32>
    %55 = arith.divf %53, %54 : vector<8x384xf32>
    %56 = vector.extract_strided_slice %55 {offsets = [0, 0], sizes = [8, 128], strides = [1, 1]} : vector<8x384xf32> to vector<8x128xf32>
    %57 = vector.extract_strided_slice %55 {offsets = [0, 128], sizes = [8, 128], strides = [1, 1]} : vector<8x384xf32> to vector<8x128xf32>
    %58 = vector.extract_strided_slice %55 {offsets = [0, 256], sizes = [8, 128], strides = [1, 1]} : vector<8x384xf32> to vector<8x128xf32>
    %59 = vector.extract_strided_slice %49 {offsets = [0, 384], sizes = [8, 128], strides = [1, 1]} : vector<8x512xf32> to vector<8x128xf32>
    %60 = math.tanh %59 : vector<8x128xf32>
    %61 = arith.mulf %57, %44 : vector<8x128xf32>
    %62 = arith.mulf %56, %60 : vector<8x128xf32>
    %63 = arith.addf %61, %62 : vector<8x128xf32>
    %64 = math.tanh %63 : vector<8x128xf32>
    %65 = arith.mulf %58, %64 : vector<8x128xf32>
    %66 = vector.extract_strided_slice %5 {offsets = [24, 0], sizes = [8, 512], strides = [1, 1]} : vector<64x512xf32> to vector<8x512xf32>
    %cst_15 = arith.constant dense<0.000000e+00> : vector<8x512xf32>
    %67 = tpu.matmul %65, %6, %cst_15 {dimension_numbers = #tpu.dot_dimension_numbers<[1], [0], [0], [1], [0, 0, 1, 1], [], []>} : vector<8x128xf32>, vector<128x512xf32>, vector<8x512xf32> -> vector<8x512xf32>
    %68 = arith.addf %66, %67 : vector<8x512xf32>
    %69 = vector.extract_strided_slice %68 {offsets = [0, 0], sizes = [8, 384], strides = [1, 1]} : vector<8x512xf32> to vector<8x384xf32>
    %70 = arith.negf %69 : vector<8x384xf32>
    %71 = math.exp %70 : vector<8x384xf32>
    %cst_16 = arith.constant 1.000000e+00 : f32
    %72 = vector.broadcast %cst_16 : f32 to vector<8x384xf32>
    %73 = arith.addf %72, %71 : vector<8x384xf32>
    %74 = arith.divf %72, %73 : vector<8x384xf32>
    %75 = vector.extract_strided_slice %74 {offsets = [0, 0], sizes = [8, 128], strides = [1, 1]} : vector<8x384xf32> to vector<8x128xf32>
    %76 = vector.extract_strided_slice %74 {offsets = [0, 128], sizes = [8, 128], strides = [1, 1]} : vector<8x384xf32> to vector<8x128xf32>
    %77 = vector.extract_strided_slice %74 {offsets = [0, 256], sizes = [8, 128], strides = [1, 1]} : vector<8x384xf32> to vector<8x128xf32>
    %78 = vector.extract_strided_slice %68 {offsets = [0, 384], sizes = [8, 128], strides = [1, 1]} : vector<8x512xf32> to vector<8x128xf32>
    %79 = math.tanh %78 : vector<8x128xf32>
    %80 = arith.mulf %76, %63 : vector<8x128xf32>
    %81 = arith.mulf %75, %79 : vector<8x128xf32>
    %82 = arith.addf %80, %81 : vector<8x128xf32>
    %83 = math.tanh %82 : vector<8x128xf32>
    %84 = arith.mulf %77, %83 : vector<8x128xf32>
    %85 = vector.extract_strided_slice %5 {offsets = [32, 0], sizes = [8, 512], strides = [1, 1]} : vector<64x512xf32> to vector<8x512xf32>
    %cst_17 = arith.constant dense<0.000000e+00> : vector<8x512xf32>
    %86 = tpu.matmul %84, %6, %cst_17 {dimension_numbers = #tpu.dot_dimension_numbers<[1], [0], [0], [1], [0, 0, 1, 1], [], []>} : vector<8x128xf32>, vector<128x512xf32>, vector<8x512xf32> -> vector<8x512xf32>
    %87 = arith.addf %85, %86 : vector<8x512xf32>
    %88 = vector.extract_strided_slice %87 {offsets = [0, 0], sizes = [8, 384], strides = [1, 1]} : vector<8x512xf32> to vector<8x384xf32>
    %89 = arith.negf %88 : vector<8x384xf32>
    %90 = math.exp %89 : vector<8x384xf32>
    %cst_18 = arith.constant 1.000000e+00 : f32
    %91 = vector.broadcast %cst_18 : f32 to vector<8x384xf32>
    %92 = arith.addf %91, %90 : vector<8x384xf32>
    %93 = arith.divf %91, %92 : vector<8x384xf32>
    %94 = vector.extract_strided_slice %93 {offsets = [0, 0], sizes = [8, 128], strides = [1, 1]} : vector<8x384xf32> to vector<8x128xf32>
    %95 = vector.extract_strided_slice %93 {offsets = [0, 128], sizes = [8, 128], strides = [1, 1]} : vector<8x384xf32> to vector<8x128xf32>
    %96 = vector.extract_strided_slice %93 {offsets = [0, 256], sizes = [8, 128], strides = [1, 1]} : vector<8x384xf32> to vector<8x128xf32>
    %97 = vector.extract_strided_slice %87 {offsets = [0, 384], sizes = [8, 128], strides = [1, 1]} : vector<8x512xf32> to vector<8x128xf32>
    %98 = math.tanh %97 : vector<8x128xf32>
    %99 = arith.mulf %95, %82 : vector<8x128xf32>
    %100 = arith.mulf %94, %98 : vector<8x128xf32>
    %101 = arith.addf %99, %100 : vector<8x128xf32>
    %102 = math.tanh %101 : vector<8x128xf32>
    %103 = arith.mulf %96, %102 : vector<8x128xf32>
    %104 = vector.extract_strided_slice %5 {offsets = [40, 0], sizes = [8, 512], strides = [1, 1]} : vector<64x512xf32> to vector<8x512xf32>
    %cst_19 = arith.constant dense<0.000000e+00> : vector<8x512xf32>
    %105 = tpu.matmul %103, %6, %cst_19 {dimension_numbers = #tpu.dot_dimension_numbers<[1], [0], [0], [1], [0, 0, 1, 1], [], []>} : vector<8x128xf32>, vector<128x512xf32>, vector<8x512xf32> -> vector<8x512xf32>
    %106 = arith.addf %104, %105 : vector<8x512xf32>
    %107 = vector.extract_strided_slice %106 {offsets = [0, 0], sizes = [8, 384], strides = [1, 1]} : vector<8x512xf32> to vector<8x384xf32>
    %108 = arith.negf %107 : vector<8x384xf32>
    %109 = math.exp %108 : vector<8x384xf32>
    %cst_20 = arith.constant 1.000000e+00 : f32
    %110 = vector.broadcast %cst_20 : f32 to vector<8x384xf32>
    %111 = arith.addf %110, %109 : vector<8x384xf32>
    %112 = arith.divf %110, %111 : vector<8x384xf32>
    %113 = vector.extract_strided_slice %112 {offsets = [0, 0], sizes = [8, 128], strides = [1, 1]} : vector<8x384xf32> to vector<8x128xf32>
    %114 = vector.extract_strided_slice %112 {offsets = [0, 128], sizes = [8, 128], strides = [1, 1]} : vector<8x384xf32> to vector<8x128xf32>
    %115 = vector.extract_strided_slice %112 {offsets = [0, 256], sizes = [8, 128], strides = [1, 1]} : vector<8x384xf32> to vector<8x128xf32>
    %116 = vector.extract_strided_slice %106 {offsets = [0, 384], sizes = [8, 128], strides = [1, 1]} : vector<8x512xf32> to vector<8x128xf32>
    %117 = math.tanh %116 : vector<8x128xf32>
    %118 = arith.mulf %114, %101 : vector<8x128xf32>
    %119 = arith.mulf %113, %117 : vector<8x128xf32>
    %120 = arith.addf %118, %119 : vector<8x128xf32>
    %121 = math.tanh %120 : vector<8x128xf32>
    %122 = arith.mulf %115, %121 : vector<8x128xf32>
    %123 = vector.extract_strided_slice %5 {offsets = [48, 0], sizes = [8, 512], strides = [1, 1]} : vector<64x512xf32> to vector<8x512xf32>
    %cst_21 = arith.constant dense<0.000000e+00> : vector<8x512xf32>
    %124 = tpu.matmul %122, %6, %cst_21 {dimension_numbers = #tpu.dot_dimension_numbers<[1], [0], [0], [1], [0, 0, 1, 1], [], []>} : vector<8x128xf32>, vector<128x512xf32>, vector<8x512xf32> -> vector<8x512xf32>
    %125 = arith.addf %123, %124 : vector<8x512xf32>
    %126 = vector.extract_strided_slice %125 {offsets = [0, 0], sizes = [8, 384], strides = [1, 1]} : vector<8x512xf32> to vector<8x384xf32>
    %127 = arith.negf %126 : vector<8x384xf32>
    %128 = math.exp %127 : vector<8x384xf32>
    %cst_22 = arith.constant 1.000000e+00 : f32
    %129 = vector.broadcast %cst_22 : f32 to vector<8x384xf32>
    %130 = arith.addf %129, %128 : vector<8x384xf32>
    %131 = arith.divf %129, %130 : vector<8x384xf32>
    %132 = vector.extract_strided_slice %131 {offsets = [0, 0], sizes = [8, 128], strides = [1, 1]} : vector<8x384xf32> to vector<8x128xf32>
    %133 = vector.extract_strided_slice %131 {offsets = [0, 128], sizes = [8, 128], strides = [1, 1]} : vector<8x384xf32> to vector<8x128xf32>
    %134 = vector.extract_strided_slice %131 {offsets = [0, 256], sizes = [8, 128], strides = [1, 1]} : vector<8x384xf32> to vector<8x128xf32>
    %135 = vector.extract_strided_slice %125 {offsets = [0, 384], sizes = [8, 128], strides = [1, 1]} : vector<8x512xf32> to vector<8x128xf32>
    %136 = math.tanh %135 : vector<8x128xf32>
    %137 = arith.mulf %133, %120 : vector<8x128xf32>
    %138 = arith.mulf %132, %136 : vector<8x128xf32>
    %139 = arith.addf %137, %138 : vector<8x128xf32>
    %140 = math.tanh %139 : vector<8x128xf32>
    %141 = arith.mulf %134, %140 : vector<8x128xf32>
    %142 = vector.extract_strided_slice %5 {offsets = [56, 0], sizes = [8, 512], strides = [1, 1]} : vector<64x512xf32> to vector<8x512xf32>
    %cst_23 = arith.constant dense<0.000000e+00> : vector<8x512xf32>
    %143 = tpu.matmul %141, %6, %cst_23 {dimension_numbers = #tpu.dot_dimension_numbers<[1], [0], [0], [1], [0, 0, 1, 1], [], []>} : vector<8x128xf32>, vector<128x512xf32>, vector<8x512xf32> -> vector<8x512xf32>
    %144 = arith.addf %142, %143 : vector<8x512xf32>
    %145 = vector.extract_strided_slice %144 {offsets = [0, 0], sizes = [8, 384], strides = [1, 1]} : vector<8x512xf32> to vector<8x384xf32>
    %146 = arith.negf %145 : vector<8x384xf32>
    %147 = math.exp %146 : vector<8x384xf32>
    %cst_24 = arith.constant 1.000000e+00 : f32
    %148 = vector.broadcast %cst_24 : f32 to vector<8x384xf32>
    %149 = arith.addf %148, %147 : vector<8x384xf32>
    %150 = arith.divf %148, %149 : vector<8x384xf32>
    %151 = vector.extract_strided_slice %150 {offsets = [0, 0], sizes = [8, 128], strides = [1, 1]} : vector<8x384xf32> to vector<8x128xf32>
    %152 = vector.extract_strided_slice %150 {offsets = [0, 128], sizes = [8, 128], strides = [1, 1]} : vector<8x384xf32> to vector<8x128xf32>
    %153 = vector.extract_strided_slice %150 {offsets = [0, 256], sizes = [8, 128], strides = [1, 1]} : vector<8x384xf32> to vector<8x128xf32>
    %154 = vector.extract_strided_slice %144 {offsets = [0, 384], sizes = [8, 128], strides = [1, 1]} : vector<8x512xf32> to vector<8x128xf32>
    %155 = math.tanh %154 : vector<8x128xf32>
    %156 = arith.mulf %152, %139 : vector<8x128xf32>
    %157 = arith.mulf %151, %155 : vector<8x128xf32>
    %158 = arith.addf %156, %157 : vector<8x128xf32>
    %159 = math.tanh %158 : vector<8x128xf32>
    %160 = arith.mulf %153, %159 : vector<8x128xf32>
    %c0_25 = arith.constant 0 : index
    %c0_26 = arith.constant 0 : index
    %161 = vector.load %arg4[%c0_25, %c0_26] : memref<128x128xf32, #tpu.memory_space<vmem>>, vector<128x128xf32>
    %cst_27 = arith.constant dense<0.000000e+00> : vector<8x128xf32>
    %162 = tpu.matmul %160, %161, %cst_27 {dimension_numbers = #tpu.dot_dimension_numbers<[1], [0], [0], [1], [0, 0, 1, 1], [], []>} : vector<8x128xf32>, vector<128x128xf32>, vector<8x128xf32> -> vector<8x128xf32>
    %c0_28 = arith.constant 0 : index
    %c0_29 = arith.constant 0 : index
    %163 = vector.load %arg5[%c0_28, %c0_29] : memref<1x128xf32, #tpu.memory_space<vmem>>, vector<1x128xf32>
    %164 = vector.broadcast %163 : vector<1x128xf32> to vector<8x128xf32>
    %165 = arith.addf %162, %164 : vector<8x128xf32>
    %c0_30 = arith.constant 0 : index
    %c0_31 = arith.constant 0 : index
    %166 = vector.load %arg6[%c0_30, %c0_31] : memref<8x128xf32, #tpu.memory_space<vmem>>, vector<8x128xf32>
    tpu.vector_store %arg6[%c0_30, %c0_31], %165 {strides = array<i32>} : memref<8x128xf32, #tpu.memory_space<vmem>>, vector<8x128xf32>,
    return
  }
}

</mosaic_0001>

<llo_original>
// kernel: tpu_custom_call.1
$region0: #{tpu_custom_call.1}
  #allocation0 [shape = 'u32[]', space=smem, size = 0x4, offset = 0x4, fixed_abs, tag = 'smem constant byte address 0x4 - core index']
  #allocation1 [shape = 'u32[72,128]{1,0:T(1,128)}', space=vmem, size = 0x9000, scoped, tag = 'internal scratch']
  %s0 = inlined_call_operand.vmem [shape: f32[64,16], index: 0, kind: input, shape index: {}]
  %s1 = inlined_call_operand.vmem [shape: f32[16,512], index: 1, kind: input, shape index: {}]
  %s2 = inlined_call_operand.hbm [shape: f32[128,512], index: 2, kind: input, shape index: {}]
  %s3 = inlined_call_operand.vmem [shape: f32[1,512], index: 3, kind: input, shape index: {}]
  %s4 = inlined_call_operand.hbm [shape: f32[128,128], index: 4, kind: input, shape index: {}]
  %s5 = inlined_call_operand.vmem [shape: f32[1,128], index: 5, kind: input, shape index: {}]
  %s6 = inlined_call_operand.hbm [shape: f32[8,128], index: 6, kind: output, shape index: {}]
  %s7 = sld [smem:[#allocation0]]
  $region42: #{tpu_custom_call.1} parent=0
    _
  %s9 = ssub.s32 1, %s7
  %s10 = scalar_select 0, %s9, %s7
  $region1: #{tpu_custom_call.1} parent=0
    #allocation2 [shape = 'u8[262144]{0}', space=vmem, size = 0x40000, scoped, tag = 'input window, operand 2, single buffered']
    #allocation3 [shape = 's32[1]{0}', space=sflag, size = 0x4, scoped, tag = 'scoped memory for tpu_custom_call.1']
    #allocation4 [shape = 's32[1]{0}', space=sflag, size = 0x4, scoped, tag = 'scoped memory for tpu_custom_call.1']
    #allocation5 [shape = 'u8[65536]{0}', space=vmem, size = 0x10000, scoped, tag = 'input window, operand 4, single buffered']
    #allocation6 [shape = 's32[1]{0}', space=sflag, size = 0x4, scoped, tag = 'scoped memory for tpu_custom_call.1']
    #allocation7 [shape = 'u8[4096]{0}', space=vmem, size = 0x1000, scoped, tag = 'output window, operand 0, single buffered']
    %11 = vsyncpa [#allocation3], 0
    %12 = vsyncpa [#allocation6], 0
    %13 = vsyncpa [#allocation4], 0
    // Predicated region
    $region2: #{tpu_custom_call.1} parent=1 // pred_check
      _
    $region3: #{tpu_custom_call.1} parent=1 // pred_check_branch
      %15 = sbr.rel (0) target = $region5
    $region4: #{tpu_custom_call.1} parent=1 // pred_region
      _
    $region5: #{tpu_custom_call.1} parent=1 // pred_fallthru
      _
    // Predicated region
    $region6: #{tpu_custom_call.1} parent=1 // pred_check
      _
    $region7: #{tpu_custom_call.1} parent=1 // pred_check_branch
      %17 = sbr.rel (0) target = $region9
    $region8: #{tpu_custom_call.1} parent=1 // pred_region
      _
    $region9: #{tpu_custom_call.1} parent=1 // pred_fallthru
      _
    // Predicated region
    $region10: #{tpu_custom_call.1} parent=1 // pred_check
      _
    $region11: #{tpu_custom_call.1} parent=1 // pred_check_branch
      %19 = sbr.rel (0) target = $region13
    $region12: #{tpu_custom_call.1} parent=1 // pred_region
      %21 = vsyncadd [#allocation3], 0
      %s22 = sshll.u32 %s2, 4
      %s23 = int_to_ptr.hbm [resolvable:$true] %s22
      %s24 = sshll.u32 [#allocation2], 4
      %s25 = int_to_ptr.vmem [resolvable:$true] %s24
      %30 = dma.hbm_to_vmem [thread:$0]  %s23, 8192, %s25, [#allocation3], 512, 512, 32
    $region13: #{tpu_custom_call.1} parent=1 // pred_fallthru
      _
    // Predicated region
    $region14: #{tpu_custom_call.1} parent=1 // pred_check
      _
    $region15: #{tpu_custom_call.1} parent=1 // pred_check_branch
      %32 = sbr.rel (0) target = $region17
    $region16: #{tpu_custom_call.1} parent=1 // pred_region
      _
    $region17: #{tpu_custom_call.1} parent=1 // pred_fallthru
      _
    // Predicated region
    $region18: #{tpu_custom_call.1} parent=1 // pred_check
      _
    $region19: #{tpu_custom_call.1} parent=1 // pred_check_branch
      %34 = sbr.rel (0) target = $region21
    $region20: #{tpu_custom_call.1} parent=1 // pred_region
      %36 = vsyncadd [#allocation6], 0
      %s37 = sshll.u32 %s4, 4
      %s38 = int_to_ptr.hbm [resolvable:$true] %s37
      %s39 = sshll.u32 [#allocation5], 4
      %s40 = int_to_ptr.vmem [resolvable:$true] %s39
      %45 = dma.hbm_to_vmem [thread:$0]  %s38, 2048, %s40, [#allocation6], 128, 128, 8
    $region21: #{tpu_custom_call.1} parent=1 // pred_fallthru
      _
    // Predicated region
    $region22: #{tpu_custom_call.1} parent=1 // pred_check
      _
    $region23: #{tpu_custom_call.1} parent=1 // pred_check_branch
      %47 = sbr.rel (0) target = $region25
    $region24: #{tpu_custom_call.1} parent=1 // pred_region
      _
    $region25: #{tpu_custom_call.1} parent=1 // pred_fallthru
      _
    // Predicated region
    $region26: #{tpu_custom_call.1} parent=1 // pred_check
      _
    $region27: #{tpu_custom_call.1} parent=1 // pred_check_branch
      %49 = sbr.rel (0) target = $region29
    $region28: #{tpu_custom_call.1} parent=1 // pred_region
      %51 = dma.done [#allocation3], 8192
    $region29: #{tpu_custom_call.1} parent=1 // pred_fallthru
      _
    // Predicated region
    $region30: #{tpu_custom_call.1} parent=1 // pred_check
      _
    $region31: #{tpu_custom_call.1} parent=1 // pred_check_branch
      %53 = sbr.rel (0) target = $region33
    $region32: #{tpu_custom_call.1} parent=1 // pred_region
      %55 = dma.done [#allocation6], 2048
    $region33: #{tpu_custom_call.1} parent=1 // pred_fallthru
      _
    %v56 = vld [vmem:[%s0] sm:$0xff]
    %v57 = vld [vmem:[%s0 + $0x8] sm:$0xff]
    %v58 = vld [vmem:[%s0 + $0x10] sm:$0xff]
    %v59 = vld [vmem:[%s0 + $0x18] sm:$0xff]
    %v60 = vld [vmem:[%s0 + $0x20] sm:$0xff]
    %v61 = vld [vmem:[%s0 + $0x28] sm:$0xff]
    %v62 = vld [vmem:[%s0 + $0x30] sm:$0xff]
    %v63 = vld [vmem:[%s0 + $0x38] sm:$0xff]
    %v64 = vld [vmem:[%s1] sm:$0xff]
    %v65 = vld [vmem:[%s1 + $0x8] sm:$0xff]
    %v66 = vld [vmem:[%s1 + $0x10] sm:$0xff]
    %v67 = vld [vmem:[%s1 + $0x18] sm:$0xff]
    %v68 = vld [vmem:[%s1 + $0x20] sm:$0xff]
    %v69 = vld [vmem:[%s1 + $0x28] sm:$0xff]
    %v70 = vld [vmem:[%s1 + $0x30] sm:$0xff]
    %v71 = vld [vmem:[%s1 + $0x38] sm:$0xff]
    %v72 = vld [vmem:[%s3] sm:$0xf]
    %v74 = vperm.slane %v72, 0
    %v75 = vperm.slane %v72, 1
    %v76 = vperm.slane %v72, 2
    %v77 = vperm.slane %v72, 3
    %vm82 = vcmask 130048
    %v84 = vsel %vm82, %v56, 0
    %v87 = vsel %vm82, %v57, 0
    %v90 = vsel %vm82, %v58, 0
    %v93 = vsel %vm82, %v59, 0
    %v96 = vsel %vm82, %v60, 0
    %v99 = vsel %vm82, %v61, 0
    %v102 = vsel %vm82, %v62, 0
    %v105 = vsel %vm82, %v63, 0
    %107 = vmatpush.msra.mxu0 0.0
    %108 = vmatpush.msra.mxu0 0.0
    %109 = vmatpush.msra.mxu0 0.0
    %110 = vmatpush.msra.mxu0 0.0
    %111 = vmatpush.msra.mxu0 0.0
    %112 = vmatpush.msra.mxu0 0.0
    %113 = vmatpush.msra.mxu0 0.0
    %114 = vmatpush.msra.mxu0 0.0
    %115 = vmatpush.msra.mxu0 0.0
    %116 = vmatpush.msra.mxu0 0.0
    %117 = vmatpush.msra.mxu0 0.0
    %118 = vmatpush.msra.mxu0 0.0
    %119 = vmatpush.msra.mxu0 0.0
    %120 = vmatpush.msra.mxu0 0.0
    %121 = vmatpush.msra.mxu0 %v68
    %122 = vmatpush.msra.mxu0 %v64
    %123 = vmatmul.f32.gmra.mxu0 %v84
    %v124 = vpop.f32.mrf.mxu0
    %v125 = vadd.f32 %v74, %v124
    %126 = vmatmul.f32.gmra.mxu0 %v87
    %v127 = vpop.f32.mrf.mxu0
    %v128 = vadd.f32 %v74, %v127
    %129 = vmatmul.f32.gmra.mxu0 %v90
    %v130 = vpop.f32.mrf.mxu0
    %v131 = vadd.f32 %v74, %v130
    %132 = vmatmul.f32.gmra.mxu0 %v93
    %v133 = vpop.f32.mrf.mxu0
    %v134 = vadd.f32 %v74, %v133
    %135 = vmatmul.f32.gmra.mxu0 %v96
    %v136 = vpop.f32.mrf.mxu0
    %v137 = vadd.f32 %v74, %v136
    %138 = vmatmul.f32.gmra.mxu0 %v99
    %v139 = vpop.f32.mrf.mxu0
    %v140 = vadd.f32 %v74, %v139
    %141 = vmatmul.f32.gmra.mxu0 %v102
    %v142 = vpop.f32.mrf.mxu0
    %v143 = vadd.f32 %v74, %v142
    %144 = vmatmul.f32.gmra.mxu0 %v105
    %v145 = vpop.f32.mrf.mxu0
    %v146 = vadd.f32 %v74, %v145
    %147 = vdwg.mxu0
    %148 = vmatpush.msra.mxu0 0.0
    %149 = vmatpush.msra.mxu0 0.0
    %150 = vmatpush.msra.mxu0 0.0
    %151 = vmatpush.msra.mxu0 0.0
    %152 = vmatpush.msra.mxu0 0.0
    %153 = vmatpush.msra.mxu0 0.0
    %154 = vmatpush.msra.mxu0 0.0
    %155 = vmatpush.msra.mxu0 0.0
    %156 = vmatpush.msra.mxu0 0.0
    %157 = vmatpush.msra.mxu0 0.0
    %158 = vmatpush.msra.mxu0 0.0
    %159 = vmatpush.msra.mxu0 0.0
    %160 = vmatpush.msra.mxu0 0.0
    %161 = vmatpush.msra.mxu0 0.0
    %162 = vmatpush.msra.mxu0 %v69
    %163 = vmatpush.msra.mxu0 %v65
    %164 = vmatmul.f32.gmra.mxu0 %v84
    %v165 = vpop.f32.mrf.mxu0
    %v166 = vadd.f32 %v75, %v165
    %167 = vmatmul.f32.gmra.mxu0 %v87
    %v168 = vpop.f32.mrf.mxu0
    %v169 = vadd.f32 %v75, %v168
    %170 = vmatmul.f32.gmra.mxu0 %v90
    %v171 = vpop.f32.mrf.mxu0
    %v172 = vadd.f32 %v75, %v171
    %173 = vmatmul.f32.gmra.mxu0 %v93
    %v174 = vpop.f32.mrf.mxu0
    %v175 = vadd.f32 %v75, %v174
    %176 = vmatmul.f32.gmra.mxu0 %v96
    %v177 = vpop.f32.mrf.mxu0
    %v178 = vadd.f32 %v75, %v177
    %179 = vmatmul.f32.gmra.mxu0 %v99
    %v180 = vpop.f32.mrf.mxu0
    %v181 = vadd.f32 %v75, %v180
    %182 = vmatmul.f32.gmra.mxu0 %v102
    %v183 = vpop.f32.mrf.mxu0
    %v184 = vadd.f32 %v75, %v183
    %185 = vmatmul.f32.gmra.mxu0 %v105
    %v186 = vpop.f32.mrf.mxu0
    %v187 = vadd.f32 %v75, %v186
    %188 = vdwg.mxu0
    %189 = vmatpush.msra.mxu0 0.0
    %190 = vmatpush.msra.mxu0 0.0
    %191 = vmatpush.msra.mxu0 0.0
    %192 = vmatpush.msra.mxu0 0.0
    %193 = vmatpush.msra.mxu0 0.0
    %194 = vmatpush.msra.mxu0 0.0
    %195 = vmatpush.msra.mxu0 0.0
    %196 = vmatpush.msra.mxu0 0.0
    %197 = vmatpush.msra.mxu0 0.0
    %198 = vmatpush.msra.mxu0 0.0
    %199 = vmatpush.msra.mxu0 0.0
    %200 = vmatpush.msra.mxu0 0.0
    %201 = vmatpush.msra.mxu0 0.0
    %202 = vmatpush.msra.mxu0 0.0
    %203 = vmatpush.msra.mxu0 %v70
    %204 = vmatpush.msra.mxu0 %v66
    %205 = vmatmul.f32.gmra.mxu0 %v84
    %v206 = vpop.f32.mrf.mxu0
    %v207 = vadd.f32 %v76, %v206
    %208 = vmatmul.f32.gmra.mxu0 %v87
    %v209 = vpop.f32.mrf.mxu0
    %v210 = vadd.f32 %v76, %v209
    %211 = vmatmul.f32.gmra.mxu0 %v90
    %v212 = vpop.f32.mrf.mxu0
    %v213 = vadd.f32 %v76, %v212
    %214 = vmatmul.f32.gmra.mxu0 %v93
    %v215 = vpop.f32.mrf.mxu0
    %v216 = vadd.f32 %v76, %v215
    %217 = vmatmul.f32.gmra.mxu0 %v96
    %v218 = vpop.f32.mrf.mxu0
    %v219 = vadd.f32 %v76, %v218
    %220 = vmatmul.f32.gmra.mxu0 %v99
    %v221 = vpop.f32.mrf.mxu0
    %v222 = vadd.f32 %v76, %v221
    %223 = vmatmul.f32.gmra.mxu0 %v102
    %v224 = vpop.f32.mrf.mxu0
    %v225 = vadd.f32 %v76, %v224
    %226 = vmatmul.f32.gmra.mxu0 %v105
    %v227 = vpop.f32.mrf.mxu0
    %v228 = vadd.f32 %v76, %v227
    %229 = vdwg.mxu0
    %230 = vmatpush.msra.mxu0 0.0
    %231 = vmatpush.msra.mxu0 0.0
    %232 = vmatpush.msra.mxu0 0.0
    %233 = vmatpush.msra.mxu0 0.0
    %234 = vmatpush.msra.mxu0 0.0
    %235 = vmatpush.msra.mxu0 0.0
    %236 = vmatpush.msra.mxu0 0.0
    %237 = vmatpush.msra.mxu0 0.0
    %238 = vmatpush.msra.mxu0 0.0
    %239 = vmatpush.msra.mxu0 0.0
    %240 = vmatpush.msra.mxu0 0.0
    %241 = vmatpush.msra.mxu0 0.0
    %242 = vmatpush.msra.mxu0 0.0
    %243 = vmatpush.msra.mxu0 0.0
    %244 = vmatpush.msra.mxu0 %v71
    %245 = vmatpush.msra.mxu0 %v67
    %246 = vmatmul.f32.gmra.mxu0 %v84
    %v247 = vpop.f32.mrf.mxu0
    %v248 = vadd.f32 %v77, %v247
    %249 = vmatmul.f32.gmra.mxu0 %v87
    %v250 = vpop.f32.mrf.mxu0
    %v251 = vadd.f32 %v77, %v250
    %252 = vmatmul.f32.gmra.mxu0 %v90
    %v253 = vpop.f32.mrf.mxu0
    %v254 = vadd.f32 %v77, %v253
    %255 = vmatmul.f32.gmra.mxu0 %v93
    %v256 = vpop.f32.mrf.mxu0
    %v257 = vadd.f32 %v77, %v256
    %258 = vmatmul.f32.gmra.mxu0 %v96
    %v259 = vpop.f32.mrf.mxu0
    %v260 = vadd.f32 %v77, %v259
    %261 = vmatmul.f32.gmra.mxu0 %v99
    %v262 = vpop.f32.mrf.mxu0
    %v263 = vadd.f32 %v77, %v262
    %264 = vmatmul.f32.gmra.mxu0 %v102
    %v265 = vpop.f32.mrf.mxu0
    %v266 = vadd.f32 %v77, %v265
    %267 = vmatmul.f32.gmra.mxu0 %v105
    %v268 = vpop.f32.mrf.mxu0
    %v269 = vadd.f32 %v77, %v268
    %270 = vdwg.mxu0
    %v271 = vld [vmem:[#allocation2] sm:$0xff]
    %v272 = vld [vmem:[#allocation2 + $0x8] sm:$0xff]
    %v273 = vld [vmem:[#allocation2 + $0x10] sm:$0xff]
    %v274 = vld [vmem:[#allocation2 + $0x18] sm:$0xff]
    %v275 = vld [vmem:[#allocation2 + $0x20] sm:$0xff]
    %v276 = vld [vmem:[#allocation2 + $0x28] sm:$0xff]
    %v277 = vld [vmem:[#allocation2 + $0x30] sm:$0xff]
    %v278 = vld [vmem:[#allocation2 + $0x38] sm:$0xff]
    %v279 = vld [vmem:[#allocation2 + $0x40] sm:$0xff]
    %v280 = vld [vmem:[#allocation2 + $0x48] sm:$0xff]
    %v281 = vld [vmem:[#allocation2 + $0x50] sm:$0xff]
    %v282 = vld [vmem:[#allocation2 + $0x58] sm:$0xff]
    %v283 = vld [vmem:[#allocation2 + $0x60] sm:$0xff]
    %v284 = vld [vmem:[#allocation2 + $0x68] sm:$0xff]
    %v285 = vld [vmem:[#allocation2 + $0x70] sm:$0xff]
    %v286 = vld [vmem:[#allocation2 + $0x78] sm:$0xff]
    %v287 = vld [vmem:[#allocation2 + $0x80] sm:$0xff]
    %v288 = vld [vmem:[#allocation2 + $0x88] sm:$0xff]
    %v289 = vld [vmem:[#allocation2 + $0x90] sm:$0xff]
    %v290 = vld [vmem:[#allocation2 + $0x98] sm:$0xff]
    %v291 = vld [vmem:[#allocation2 + $0xa0] sm:$0xff]
    %v292 = vld [vmem:[#allocation2 + $0xa8] sm:$0xff]
    %v293 = vld [vmem:[#allocation2 + $0xb0] sm:$0xff]
    %v294 = vld [vmem:[#allocation2 + $0xb8] sm:$0xff]
    %v295 = vld [vmem:[#allocation2 + $0xc0] sm:$0xff]
    %v296 = vld [vmem:[#allocation2 + $0xc8] sm:$0xff]
    %v297 = vld [vmem:[#allocation2 + $0xd0] sm:$0xff]
    %v298 = vld [vmem:[#allocation2 + $0xd8] sm:$0xff]
    %v299 = vld [vmem:[#allocation2 + $0xe0] sm:$0xff]
    %v300 = vld [vmem:[#allocation2 + $0xe8] sm:$0xff]
    %v301 = vld [vmem:[#allocation2 + $0xf0] sm:$0xff]
    %v302 = vld [vmem:[#allocation2 + $0xf8] sm:$0xff]
    %v303 = vld [vmem:[#allocation2 + $0x100] sm:$0xff]
    %v304 = vld [vmem:[#allocation2 + $0x108] sm:$0xff]
    %v305 = vld [vmem:[#allocation2 + $0x110] sm:$0xff]
    %v306 = vld [vmem:[#allocation2 + $0x118] sm:$0xff]
    %v307 = vld [vmem:[#allocation2 + $0x120] sm:$0xff]
    %v308 = vld [vmem:[#allocation2 + $0x128] sm:$0xff]
    %v309 = vld [vmem:[#allocation2 + $0x130] sm:$0xff]
    %v310 = vld [vmem:[#allocation2 + $0x138] sm:$0xff]
    %v311 = vld [vmem:[#allocation2 + $0x140] sm:$0xff]
    %v312 = vld [vmem:[#allocation2 + $0x148] sm:$0xff]
    %v313 = vld [vmem:[#allocation2 + $0x150] sm:$0xff]
    %v314 = vld [vmem:[#allocation2 + $0x158] sm:$0xff]
    %v315 = vld [vmem:[#allocation2 + $0x160] sm:$0xff]
    %v316 = vld [vmem:[#allocation2 + $0x168] sm:$0xff]
    %v317 = vld [vmem:[#allocation2 + $0x170] sm:$0xff]
    %v318 = vld [vmem:[#allocation2 + $0x178] sm:$0xff]
    %v319 = vld [vmem:[#allocation2 + $0x180] sm:$0xff]
    %v320 = vld [vmem:[#allocation2 + $0x188] sm:$0xff]
    %v321 = vld [vmem:[#allocation2 + $0x190] sm:$0xff]
    %v322 = vld [vmem:[#allocation2 + $0x198] sm:$0xff]
    %v323 = vld [vmem:[#allocation2 + $0x1a0] sm:$0xff]
    %v324 = vld [vmem:[#allocation2 + $0x1a8] sm:$0xff]
    %v325 = vld [vmem:[#allocation2 + $0x1b0] sm:$0xff]
    %v326 = vld [vmem:[#allocation2 + $0x1b8] sm:$0xff]
    %v327 = vld [vmem:[#allocation2 + $0x1c0] sm:$0xff]
    %v328 = vld [vmem:[#allocation2 + $0x1c8] sm:$0xff]
    %v329 = vld [vmem:[#allocation2 + $0x1d0] sm:$0xff]
    %v330 = vld [vmem:[#allocation2 + $0x1d8] sm:$0xff]
    %v331 = vld [vmem:[#allocation2 + $0x1e0] sm:$0xff]
    %v332 = vld [vmem:[#allocation2 + $0x1e8] sm:$0xff]
    %v333 = vld [vmem:[#allocation2 + $0x1f0] sm:$0xff]
    %v334 = vld [vmem:[#allocation2 + $0x1f8] sm:$0xff]
    %335 = vmatpush.msra.mxu0 %v331
    %336 = vmatpush.msra.mxu0 %v327
    %337 = vmatpush.msra.mxu0 %v323
    %338 = vmatpush.msra.mxu0 %v319
    %339 = vmatpush.msra.mxu0 %v315
    %340 = vmatpush.msra.mxu0 %v311
    %341 = vmatpush.msra.mxu0 %v307
    %342 = vmatpush.msra.mxu0 %v303
    %343 = vmatpush.msra.mxu0 %v299
    %344 = vmatpush.msra.mxu0 %v295
    %345 = vmatpush.msra.mxu0 %v291
    %346 = vmatpush.msra.mxu0 %v287
    %347 = vmatpush.msra.mxu0 %v283
    %348 = vmatpush.msra.mxu0 %v279
    %349 = vmatpush.msra.mxu0 %v275
    %350 = vmatpush.msra.mxu0 %v271
    %351 = vmatmul.f32.gmra.mxu0 0.0
    %v352 = vpop.f32.mrf.mxu0
    %v353 = vadd.f32 0.0, %v352
    %354 = vdwg.mxu0
    %355 = vmatpush.msra.mxu0 %v332
    %356 = vmatpush.msra.mxu0 %v328
    %357 = vmatpush.msra.mxu0 %v324
    %358 = vmatpush.msra.mxu0 %v320
    %359 = vmatpush.msra.mxu0 %v316
    %360 = vmatpush.msra.mxu0 %v312
    %361 = vmatpush.msra.mxu0 %v308
    %362 = vmatpush.msra.mxu0 %v304
    %363 = vmatpush.msra.mxu0 %v300
    %364 = vmatpush.msra.mxu0 %v296
    %365 = vmatpush.msra.mxu0 %v292
    %366 = vmatpush.msra.mxu0 %v288
    %367 = vmatpush.msra.mxu0 %v284
    %368 = vmatpush.msra.mxu0 %v280
    %369 = vmatpush.msra.mxu0 %v276
    %370 = vmatpush.msra.mxu0 %v272
    %371 = vmatmul.f32.gmra.mxu0 0.0
    %v372 = vpop.f32.mrf.mxu0
    %v373 = vadd.f32 0.0, %v372
    %374 = vdwg.mxu0
    %375 = vmatpush.msra.mxu0 %v333
    %376 = vmatpush.msra.mxu0 %v329
    %377 = vmatpush.msra.mxu0 %v325
    %378 = vmatpush.msra.mxu0 %v321
    %379 = vmatpush.msra.mxu0 %v317
    %380 = vmatpush.msra.mxu0 %v313
    %381 = vmatpush.msra.mxu0 %v309
    %382 = vmatpush.msra.mxu0 %v305
    %383 = vmatpush.msra.mxu0 %v301
    %384 = vmatpush.msra.mxu0 %v297
    %385 = vmatpush.msra.mxu0 %v293
    %386 = vmatpush.msra.mxu0 %v289
    %387 = vmatpush.msra.mxu0 %v285
    %388 = vmatpush.msra.mxu0 %v281
    %389 = vmatpush.msra.mxu0 %v277
    %390 = vmatpush.msra.mxu0 %v273
    %391 = vmatmul.f32.gmra.mxu0 0.0
    %v392 = vpop.f32.mrf.mxu0
    %v393 = vadd.f32 0.0, %v392
    %394 = vdwg.mxu0
    %395 = vmatpush.msra.mxu0 %v334
    %396 = vmatpush.msra.mxu0 %v330
    %397 = vmatpush.msra.mxu0 %v326
    %398 = vmatpush.msra.mxu0 %v322
    %399 = vmatpush.msra.mxu0 %v318
    %400 = vmatpush.msra.mxu0 %v314
    %401 = vmatpush.msra.mxu0 %v310
    %402 = vmatpush.msra.mxu0 %v306
    %403 = vmatpush.msra.mxu0 %v302
    %404 = vmatpush.msra.mxu0 %v298
    %405 = vmatpush.msra.mxu0 %v294
    %406 = vmatpush.msra.mxu0 %v290
    %407 = vmatpush.msra.mxu0 %v286
    %408 = vmatpush.msra.mxu0 %v282
    %409 = vmatpush.msra.mxu0 %v278
    %410 = vmatpush.msra.mxu0 %v274
    %411 = vmatmul.f32.gmra.mxu0 0.0
    %v412 = vpop.f32.mrf.mxu0
    %v413 = vadd.f32 0.0, %v412
    %414 = vdwg.mxu0
    %v415 = vadd.f32 %v125, %v353
    %v416 = vadd.f32 %v166, %v373
    %v417 = vadd.f32 %v207, %v393
    %v418 = vadd.f32 %v248, %v413
    %v419 = vxor.u32 %v415, 2147483648
    %v420 = vxor.u32 %v416, 2147483648
    %v421 = vxor.u32 %v417, 2147483648
    %v422 = vmul.f32 %v419, 1.442695
    %v423 = vpow.pop %v422
    %v424 = vmul.f32 %v420, 1.442695
    %v425 = vpow.pop %v424
    %v426 = vmul.f32 %v421, 1.442695
    %v427 = vpow.pop %v426
    %v428 = vadd.f32 %v423, 1.0
    %v429 = vadd.f32 %v425, 1.0
    %v430 = vadd.f32 %v427, 1.0
    %v431 = vrcp.pop %v428
    %v432 = vmul.f32 %v428, %v431
    %v433 = vsub.f32 1.0, %v432
    %v434 = vmul.f32 %v431, %v433
    %v435 = vadd.f32 %v431, %v434
    %vm436 = vweird.f32 %v428
    %vm437 = vweird.f32 %v431
    %vm438 = vmor %vm436, %vm437
    %v439 = vsel %vm438, %v431, %v435
    %v440 = vand.u32 2147483647, %v428
    %vm441 = vcmp.eq.f32.partialorder %v440, 8.507059e+37
    %v442 = vand.u32 %v428, 2147483648
    %v443 = vor.u32 1.1754944e-38, %v442
    %v444 = vsel %vm441, %v443, %v439
    %v445 = vmul.f32 1.0, %v444
    %v446 = vrcp.pop %v429
    %v447 = vmul.f32 %v429, %v446
    %v448 = vsub.f32 1.0, %v447
    %v449 = vmul.f32 %v446, %v448
    %v450 = vadd.f32 %v446, %v449
    %vm451 = vweird.f32 %v429
    %vm452 = vweird.f32 %v446
    %vm453 = vmor %vm451, %vm452
    %v454 = vsel %vm453, %v446, %v450
    %v455 = vand.u32 2147483647, %v429
    %vm456 = vcmp.eq.f32.partialorder %v455, 8.507059e+37
    %v457 = vand.u32 %v429, 2147483648
    %v458 = vor.u32 1.1754944e-38, %v457
    %v459 = vsel %vm456, %v458, %v454
    %v460 = vmul.f32 1.0, %v459
    %v461 = vrcp.pop %v430
    %v462 = vmul.f32 %v430, %v461
    %v463 = vsub.f32 1.0, %v462
    %v464 = vmul.f32 %v461, %v463
    %v465 = vadd.f32 %v461, %v464
    %vm466 = vweird.f32 %v430
    %vm467 = vweird.f32 %v461
    %vm468 = vmor %vm466, %vm467
    %v469 = vsel %vm468, %v461, %v465
    %v470 = vand.u32 2147483647, %v430
    %vm471 = vcmp.eq.f32.partialorder %v470, 8.507059e+37
    %v472 = vand.u32 %v430, 2147483648
    %v473 = vor.u32 1.1754944e-38, %v472
    %v474 = vsel %vm471, %v473, %v469
    %v475 = vmul.f32 1.0, %v474
    %v476 = vtanh.pop %v418
    %v477 = vmul.f32 %v460, 0.0
    %v478 = vmul.f32 %v445, %v476
    %v479 = vadd.f32 %v477, %v478
    %v480 = vtanh.pop %v479
    %v481 = vmul.f32 %v475, %v480
    %482 = vmatpush.msra.mxu0 %v331
    %483 = vmatpush.msra.mxu0 %v327
    %484 = vmatpush.msra.mxu0 %v323
    %485 = vmatpush.msra.mxu0 %v319
    %486 = vmatpush.msra.mxu0 %v315
    %487 = vmatpush.msra.mxu0 %v311
    %488 = vmatpush.msra.mxu0 %v307
    %489 = vmatpush.msra.mxu0 %v303
    %490 = vmatpush.msra.mxu0 %v299
    %491 = vmatpush.msra.mxu0 %v295
    %492 = vmatpush.msra.mxu0 %v291
    %493 = vmatpush.msra.mxu0 %v287
    %494 = vmatpush.msra.mxu0 %v283
    %495 = vmatpush.msra.mxu0 %v279
    %496 = vmatpush.msra.mxu0 %v275
    %497 = vmatpush.msra.mxu0 %v271
    %498 = vmatmul.f32.gmra.mxu0 %v481
    %v499 = vpop.f32.mrf.mxu0
    %v500 = vadd.f32 0.0, %v499
    %501 = vdwg.mxu0
    %502 = vmatpush.msra.mxu0 %v332
    %503 = vmatpush.msra.mxu0 %v328
    %504 = vmatpush.msra.mxu0 %v324
    %505 = vmatpush.msra.mxu0 %v320
    %506 = vmatpush.msra.mxu0 %v316
    %507 = vmatpush.msra.mxu0 %v312
    %508 = vmatpush.msra.mxu0 %v308
    %509 = vmatpush.msra.mxu0 %v304
    %510 = vmatpush.msra.mxu0 %v300
    %511 = vmatpush.msra.mxu0 %v296
    %512 = vmatpush.msra.mxu0 %v292
    %513 = vmatpush.msra.mxu0 %v288
    %514 = vmatpush.msra.mxu0 %v284
    %515 = vmatpush.msra.mxu0 %v280
    %516 = vmatpush.msra.mxu0 %v276
    %517 = vmatpush.msra.mxu0 %v272
    %518 = vmatmul.f32.gmra.mxu0 %v481
    %v519 = vpop.f32.mrf.mxu0
    %v520 = vadd.f32 0.0, %v519
    %521 = vdwg.mxu0
    %522 = vmatpush.msra.mxu0 %v333
    %523 = vmatpush.msra.mxu0 %v329
    %524 = vmatpush.msra.mxu0 %v325
    %525 = vmatpush.msra.mxu0 %v321
    %526 = vmatpush.msra.mxu0 %v317
    %527 = vmatpush.msra.mxu0 %v313
    %528 = vmatpush.msra.mxu0 %v309
    %529 = vmatpush.msra.mxu0 %v305
    %530 = vmatpush.msra.mxu0 %v301
    %531 = vmatpush.msra.mxu0 %v297
    %532 = vmatpush.msra.mxu0 %v293
    %533 = vmatpush.msra.mxu0 %v289
    %534 = vmatpush.msra.mxu0 %v285
    %535 = vmatpush.msra.mxu0 %v281
    %536 = vmatpush.msra.mxu0 %v277
    %537 = vmatpush.msra.mxu0 %v273
    %538 = vmatmul.f32.gmra.mxu0 %v481
    %v539 = vpop.f32.mrf.mxu0
    %v540 = vadd.f32 0.0, %v539
    %541 = vdwg.mxu0
    %542 = vmatpush.msra.mxu0 %v334
    %543 = vmatpush.msra.mxu0 %v330
    %544 = vmatpush.msra.mxu0 %v326
    %545 = vmatpush.msra.mxu0 %v322
    %546 = vmatpush.msra.mxu0 %v318
    %547 = vmatpush.msra.mxu0 %v314
    %548 = vmatpush.msra.mxu0 %v310
    %549 = vmatpush.msra.mxu0 %v306
    %550 = vmatpush.msra.mxu0 %v302
    %551 = vmatpush.msra.mxu0 %v298
    %552 = vmatpush.msra.mxu0 %v294
    %553 = vmatpush.msra.mxu0 %v290
    %554 = vmatpush.msra.mxu0 %v286
    %555 = vmatpush.msra.mxu0 %v282
    %556 = vmatpush.msra.mxu0 %v278
    %557 = vmatpush.msra.mxu0 %v274
    %558 = vmatmul.f32.gmra.mxu0 %v481
    %v559 = vpop.f32.mrf.mxu0
    %v560 = vadd.f32 0.0, %v559
    %561 = vdwg.mxu0
    %v562 = vadd.f32 %v128, %v500
    %v563 = vadd.f32 %v169, %v520
    %v564 = vadd.f32 %v210, %v540
    %v565 = vadd.f32 %v251, %v560
    %v566 = vxor.u32 %v562, 2147483648
    %v567 = vxor.u32 %v563, 2147483648
    %v568 = vxor.u32 %v564, 2147483648
    %v569 = vmul.f32 %v566, 1.442695
    %v570 = vpow.pop %v569
    %v571 = vmul.f32 %v567, 1.442695
    %v572 = vpow.pop %v571
    %v573 = vmul.f32 %v568, 1.442695
    %v574 = vpow.pop %v573
    %v575 = vadd.f32 %v570, 1.0
    %v576 = vadd.f32 %v572, 1.0
    %v577 = vadd.f32 %v574, 1.0
    %v578 = vrcp.pop %v575
    %v579 = vmul.f32 %v575, %v578
    %v580 = vsub.f32 1.0, %v579
    %v581 = vmul.f32 %v578, %v580
    %v582 = vadd.f32 %v578, %v581
    %vm583 = vweird.f32 %v575
    %vm584 = vweird.f32 %v578
    %vm585 = vmor %vm583, %vm584
    %v586 = vsel %vm585, %v578, %v582
    %v587 = vand.u32 2147483647, %v575
    %vm588 = vcmp.eq.f32.partialorder %v587, 8.507059e+37
    %v589 = vand.u32 %v575, 2147483648
    %v590 = vor.u32 1.1754944e-38, %v589
    %v591 = vsel %vm588, %v590, %v586
    %v592 = vmul.f32 1.0, %v591
    %v593 = vrcp.pop %v576
    %v594 = vmul.f32 %v576, %v593
    %v595 = vsub.f32 1.0, %v594
    %v596 = vmul.f32 %v593, %v595
    %v597 = vadd.f32 %v593, %v596
    %vm598 = vweird.f32 %v576
    %vm599 = vweird.f32 %v593
    %vm600 = vmor %vm598, %vm599
    %v601 = vsel %vm600, %v593, %v597
    %v602 = vand.u32 2147483647, %v576
    %vm603 = vcmp.eq.f32.partialorder %v602, 8.507059e+37
    %v604 = vand.u32 %v576, 2147483648
    %v605 = vor.u32 1.1754944e-38, %v604
    %v606 = vsel %vm603, %v605, %v601
    %v607 = vmul.f32 1.0, %v606
    %v608 = vrcp.pop %v577
    %v609 = vmul.f32 %v577, %v608
    %v610 = vsub.f32 1.0, %v609
    %v611 = vmul.f32 %v608, %v610
    %v612 = vadd.f32 %v608, %v611
    %vm613 = vweird.f32 %v577
    %vm614 = vweird.f32 %v608
    %vm615 = vmor %vm613, %vm614
    %v616 = vsel %vm615, %v608, %v612
    %v617 = vand.u32 2147483647, %v577
    %vm618 = vcmp.eq.f32.partialorder %v617, 8.507059e+37
    %v619 = vand.u32 %v577, 2147483648
    %v620 = vor.u32 1.1754944e-38, %v619
    %v621 = vsel %vm618, %v620, %v616
    %v622 = vmul.f32 1.0, %v621
    %v623 = vtanh.pop %v565
    %v624 = vmul.f32 %v607, %v479
    %v625 = vmul.f32 %v592, %v623
    %v626 = vadd.f32 %v624, %v625
    %v627 = vtanh.pop %v626
    %v628 = vmul.f32 %v622, %v627
    %629 = vmatpush.msra.mxu0 %v331
    %630 = vmatpush.msra.mxu0 %v327
    %631 = vmatpush.msra.mxu0 %v323
    %632 = vmatpush.msra.mxu0 %v319
    %633 = vmatpush.msra.mxu0 %v315
    %634 = vmatpush.msra.mxu0 %v311
    %635 = vmatpush.msra.mxu0 %v307
    %636 = vmatpush.msra.mxu0 %v303
    %637 = vmatpush.msra.mxu0 %v299
    %638 = vmatpush.msra.mxu0 %v295
    %639 = vmatpush.msra.mxu0 %v291
    %640 = vmatpush.msra.mxu0 %v287
    %641 = vmatpush.msra.mxu0 %v283
    %642 = vmatpush.msra.mxu0 %v279
    %643 = vmatpush.msra.mxu0 %v275
    %644 = vmatpush.msra.mxu0 %v271
    %645 = vmatmul.f32.gmra.mxu0 %v628
    %v646 = vpop.f32.mrf.mxu0
    %v647 = vadd.f32 0.0, %v646
    %648 = vdwg.mxu0
    %649 = vmatpush.msra.mxu0 %v332
    %650 = vmatpush.msra.mxu0 %v328
    %651 = vmatpush.msra.mxu0 %v324
    %652 = vmatpush.msra.mxu0 %v320
    %653 = vmatpush.msra.mxu0 %v316
    %654 = vmatpush.msra.mxu0 %v312
    %655 = vmatpush.msra.mxu0 %v308
    %656 = vmatpush.msra.mxu0 %v304
    %657 = vmatpush.msra.mxu0 %v300
    %658 = vmatpush.msra.mxu0 %v296
    %659 = vmatpush.msra.mxu0 %v292
    %660 = vmatpush.msra.mxu0 %v288
    %661 = vmatpush.msra.mxu0 %v284
    %662 = vmatpush.msra.mxu0 %v280
    %663 = vmatpush.msra.mxu0 %v276
    %664 = vmatpush.msra.mxu0 %v272
    %665 = vmatmul.f32.gmra.mxu0 %v628
    %v666 = vpop.f32.mrf.mxu0
    %v667 = vadd.f32 0.0, %v666
    %668 = vdwg.mxu0
    %669 = vmatpush.msra.mxu0 %v333
    %670 = vmatpush.msra.mxu0 %v329
    %671 = vmatpush.msra.mxu0 %v325
    %672 = vmatpush.msra.mxu0 %v321
    %673 = vmatpush.msra.mxu0 %v317
    %674 = vmatpush.msra.mxu0 %v313
    %675 = vmatpush.msra.mxu0 %v309
    %676 = vmatpush.msra.mxu0 %v305
    %677 = vmatpush.msra.mxu0 %v301
    %678 = vmatpush.msra.mxu0 %v297
    %679 = vmatpush.msra.mxu0 %v293
    %680 = vmatpush.msra.mxu0 %v289
    %681 = vmatpush.msra.mxu0 %v285
    %682 = vmatpush.msra.mxu0 %v281
    %683 = vmatpush.msra.mxu0 %v277
    %684 = vmatpush.msra.mxu0 %v273
    %685 = vmatmul.f32.gmra.mxu0 %v628
    %v686 = vpop.f32.mrf.mxu0
    %v687 = vadd.f32 0.0, %v686
    %688 = vdwg.mxu0
    %689 = vmatpush.msra.mxu0 %v334
    %690 = vmatpush.msra.mxu0 %v330
    %691 = vmatpush.msra.mxu0 %v326
    %692 = vmatpush.msra.mxu0 %v322
    %693 = vmatpush.msra.mxu0 %v318
    %694 = vmatpush.msra.mxu0 %v314
    %695 = vmatpush.msra.mxu0 %v310
    %696 = vmatpush.msra.mxu0 %v306
    %697 = vmatpush.msra.mxu0 %v302
    %698 = vmatpush.msra.mxu0 %v298
    %699 = vmatpush.msra.mxu0 %v294
    %700 = vmatpush.msra.mxu0 %v290
    %701 = vmatpush.msra.mxu0 %v286
    %702 = vmatpush.msra.mxu0 %v282
    %703 = vmatpush.msra.mxu0 %v278
    %704 = vmatpush.msra.mxu0 %v274
    %705 = vmatmul.f32.gmra.mxu0 %v628
    %v706 = vpop.f32.mrf.mxu0
    %v707 = vadd.f32 0.0, %v706
    %708 = vdwg.mxu0
    %v709 = vadd.f32 %v131, %v647
    %v710 = vadd.f32 %v172, %v667
    %v711 = vadd.f32 %v213, %v687
    %v712 = vadd.f32 %v254, %v707
    %v713 = vxor.u32 %v709, 2147483648
    %v714 = vxor.u32 %v710, 2147483648
    %v715 = vxor.u32 %v711, 2147483648
    %v716 = vmul.f32 %v713, 1.442695
    %v717 = vpow.pop %v716
    %v718 = vmul.f32 %v714, 1.442695
    %v719 = vpow.pop %v718
    %v720 = vmul.f32 %v715, 1.442695
    %v721 = vpow.pop %v720
    %v722 = vadd.f32 %v717, 1.0
    %v723 = vadd.f32 %v719, 1.0
    %v724 = vadd.f32 %v721, 1.0
    %v725 = vrcp.pop %v722
    %v726 = vmul.f32 %v722, %v725
    %v727 = vsub.f32 1.0, %v726
    %v728 = vmul.f32 %v725, %v727
    %v729 = vadd.f32 %v725, %v728
    %vm730 = vweird.f32 %v722
    %vm731 = vweird.f32 %v725
    %vm732 = vmor %vm730, %vm731
    %v733 = vsel %vm732, %v725, %v729
    %v734 = vand.u32 2147483647, %v722
    %vm735 = vcmp.eq.f32.partialorder %v734, 8.507059e+37
    %v736 = vand.u32 %v722, 2147483648
    %v737 = vor.u32 1.1754944e-38, %v736
    %v738 = vsel %vm735, %v737, %v733
    %v739 = vmul.f32 1.0, %v738
    %v740 = vrcp.pop %v723
    %v741 = vmul.f32 %v723, %v740
    %v742 = vsub.f32 1.0, %v741
    %v743 = vmul.f32 %v740, %v742
    %v744 = vadd.f32 %v740, %v743
    %vm745 = vweird.f32 %v723
    %vm746 = vweird.f32 %v740
    %vm747 = vmor %vm745, %vm746
    %v748 = vsel %vm747, %v740, %v744
    %v749 = vand.u32 2147483647, %v723
    %vm750 = vcmp.eq.f32.partialorder %v749, 8.507059e+37
    %v751 = vand.u32 %v723, 2147483648
    %v752 = vor.u32 1.1754944e-38, %v751
    %v753 = vsel %vm750, %v752, %v748
    %v754 = vmul.f32 1.0, %v753
    %v755 = vrcp.pop %v724
    %v756 = vmul.f32 %v724, %v755
    %v757 = vsub.f32 1.0, %v756
    %v758 = vmul.f32 %v755, %v757
    %v759 = vadd.f32 %v755, %v758
    %vm760 = vweird.f32 %v724
    %vm761 = vweird.f32 %v755
    %vm762 = vmor %vm760, %vm761
    %v763 = vsel %vm762, %v755, %v759
    %v764 = vand.u32 2147483647, %v724
    %vm765 = vcmp.eq.f32.partialorder %v764, 8.507059e+37
    %v766 = vand.u32 %v724, 2147483648
    %v767 = vor.u32 1.1754944e-38, %v766
    %v768 = vsel %vm765, %v767, %v763
    %v769 = vmul.f32 1.0, %v768
    %v770 = vtanh.pop %v712
    %v771 = vmul.f32 %v754, %v626
    %v772 = vmul.f32 %v739, %v770
    %v773 = vadd.f32 %v771, %v772
    %v774 = vtanh.pop %v773
    %v775 = vmul.f32 %v769, %v774
    %776 = vmatpush.msra.mxu0 %v331
    %777 = vmatpush.msra.mxu0 %v327
    %778 = vmatpush.msra.mxu0 %v323
    %779 = vmatpush.msra.mxu0 %v319
    %780 = vmatpush.msra.mxu0 %v315
    %781 = vmatpush.msra.mxu0 %v311
    %782 = vmatpush.msra.mxu0 %v307
    %783 = vmatpush.msra.mxu0 %v303
    %784 = vmatpush.msra.mxu0 %v299
    %785 = vmatpush.msra.mxu0 %v295
    %786 = vmatpush.msra.mxu0 %v291
    %787 = vmatpush.msra.mxu0 %v287
    %788 = vmatpush.msra.mxu0 %v283
    %789 = vmatpush.msra.mxu0 %v279
    %790 = vmatpush.msra.mxu0 %v275
    %791 = vmatpush.msra.mxu0 %v271
    %792 = vmatmul.f32.gmra.mxu0 %v775
    %v793 = vpop.f32.mrf.mxu0
    %v794 = vadd.f32 0.0, %v793
    %795 = vdwg.mxu0
    %796 = vmatpush.msra.mxu0 %v332
    %797 = vmatpush.msra.mxu0 %v328
    %798 = vmatpush.msra.mxu0 %v324
    %799 = vmatpush.msra.mxu0 %v320
    %800 = vmatpush.msra.mxu0 %v316
    %801 = vmatpush.msra.mxu0 %v312
    %802 = vmatpush.msra.mxu0 %v308
    %803 = vmatpush.msra.mxu0 %v304
    %804 = vmatpush.msra.mxu0 %v300
    %805 = vmatpush.msra.mxu0 %v296
    %806 = vmatpush.msra.mxu0 %v292
    %807 = vmatpush.msra.mxu0 %v288
    %808 = vmatpush.msra.mxu0 %v284
    %809 = vmatpush.msra.mxu0 %v280
    %810 = vmatpush.msra.mxu0 %v276
    %811 = vmatpush.msra.mxu0 %v272
    %812 = vmatmul.f32.gmra.mxu0 %v775
    %v813 = vpop.f32.mrf.mxu0
    %v814 = vadd.f32 0.0, %v813
    %815 = vdwg.mxu0
    %816 = vmatpush.msra.mxu0 %v333
    %817 = vmatpush.msra.mxu0 %v329
    %818 = vmatpush.msra.mxu0 %v325
    %819 = vmatpush.msra.mxu0 %v321
    %820 = vmatpush.msra.mxu0 %v317
    %821 = vmatpush.msra.mxu0 %v313
    %822 = vmatpush.msra.mxu0 %v309
    %823 = vmatpush.msra.mxu0 %v305
    %824 = vmatpush.msra.mxu0 %v301
    %825 = vmatpush.msra.mxu0 %v297
    %826 = vmatpush.msra.mxu0 %v293
    %827 = vmatpush.msra.mxu0 %v289
    %828 = vmatpush.msra.mxu0 %v285
    %829 = vmatpush.msra.mxu0 %v281
    %830 = vmatpush.msra.mxu0 %v277
    %831 = vmatpush.msra.mxu0 %v273
    %832 = vmatmul.f32.gmra.mxu0 %v775
    %v833 = vpop.f32.mrf.mxu0
    %v834 = vadd.f32 0.0, %v833
    %835 = vdwg.mxu0
    %836 = vmatpush.msra.mxu0 %v334
    %837 = vmatpush.msra.mxu0 %v330
    %838 = vmatpush.msra.mxu0 %v326
    %839 = vmatpush.msra.mxu0 %v322
    %840 = vmatpush.msra.mxu0 %v318
    %841 = vmatpush.msra.mxu0 %v314
    %842 = vmatpush.msra.mxu0 %v310
    %843 = vmatpush.msra.mxu0 %v306
    %844 = vmatpush.msra.mxu0 %v302
    %845 = vmatpush.msra.mxu0 %v298
    %846 = vmatpush.msra.mxu0 %v294
    %847 = vmatpush.msra.mxu0 %v290
    %848 = vmatpush.msra.mxu0 %v286
    %849 = vmatpush.msra.mxu0 %v282
    %850 = vmatpush.msra.mxu0 %v278
    %851 = vmatpush.msra.mxu0 %v274
    %852 = vmatmul.f32.gmra.mxu0 %v775
    %v853 = vpop.f32.mrf.mxu0
    %v854 = vadd.f32 0.0, %v853
    %855 = vdwg.mxu0
    %v856 = vadd.f32 %v134, %v794
    %v857 = vadd.f32 %v175, %v814
    %v858 = vadd.f32 %v216, %v834
    %v859 = vadd.f32 %v257, %v854
    %v860 = vxor.u32 %v856, 2147483648
    %v861 = vxor.u32 %v857, 2147483648
    %v862 = vxor.u32 %v858, 2147483648
    %v863 = vmul.f32 %v860, 1.442695
    %v864 = vpow.pop %v863
    %v865 = vmul.f32 %v861, 1.442695
    %v866 = vpow.pop %v865
    %v867 = vmul.f32 %v862, 1.442695
    %v868 = vpow.pop %v867
    %v869 = vadd.f32 %v864, 1.0
    %v870 = vadd.f32 %v866, 1.0
    %v871 = vadd.f32 %v868, 1.0
    %v872 = vrcp.pop %v869
    %v873 = vmul.f32 %v869, %v872
    %v874 = vsub.f32 1.0, %v873
    %v875 = vmul.f32 %v872, %v874
    %v876 = vadd.f32 %v872, %v875
    %vm877 = vweird.f32 %v869
    %vm878 = vweird.f32 %v872
    %vm879 = vmor %vm877, %vm878
    %v880 = vsel %vm879, %v872, %v876
    %v881 = vand.u32 2147483647, %v869
    %vm882 = vcmp.eq.f32.partialorder %v881, 8.507059e+37
    %v883 = vand.u32 %v869, 2147483648
    %v884 = vor.u32 1.1754944e-38, %v883
    %v885 = vsel %vm882, %v884, %v880
    %v886 = vmul.f32 1.0, %v885
    %v887 = vrcp.pop %v870
    %v888 = vmul.f32 %v870, %v887
    %v889 = vsub.f32 1.0, %v888
    %v890 = vmul.f32 %v887, %v889
    %v891 = vadd.f32 %v887, %v890
    %vm892 = vweird.f32 %v870
    %vm893 = vweird.f32 %v887
    %vm894 = vmor %vm892, %vm893
    %v895 = vsel %vm894, %v887, %v891
    %v896 = vand.u32 2147483647, %v870
    %vm897 = vcmp.eq.f32.partialorder %v896, 8.507059e+37
    %v898 = vand.u32 %v870, 2147483648
    %v899 = vor.u32 1.1754944e-38, %v898
    %v900 = vsel %vm897, %v899, %v895
    %v901 = vmul.f32 1.0, %v900
    %v902 = vrcp.pop %v871
    %v903 = vmul.f32 %v871, %v902
    %v904 = vsub.f32 1.0, %v903
    %v905 = vmul.f32 %v902, %v904
    %v906 = vadd.f32 %v902, %v905
    %vm907 = vweird.f32 %v871
    %vm908 = vweird.f32 %v902
    %vm909 = vmor %vm907, %vm908
    %v910 = vsel %vm909, %v902, %v906
    %v911 = vand.u32 2147483647, %v871
    %vm912 = vcmp.eq.f32.partialorder %v911, 8.507059e+37
    %v913 = vand.u32 %v871, 2147483648
    %v914 = vor.u32 1.1754944e-38, %v913
    %v915 = vsel %vm912, %v914, %v910
    %v916 = vmul.f32 1.0, %v915
    %v917 = vtanh.pop %v859
    %v918 = vmul.f32 %v901, %v773
    %v919 = vmul.f32 %v886, %v917
    %v920 = vadd.f32 %v918, %v919
    %v921 = vtanh.pop %v920
    %v922 = vmul.f32 %v916, %v921
    %923 = vmatpush.msra.mxu0 %v331
    %924 = vmatpush.msra.mxu0 %v327
    %925 = vmatpush.msra.mxu0 %v323
    %926 = vmatpush.msra.mxu0 %v319
    %927 = vmatpush.msra.mxu0 %v315
    %928 = vmatpush.msra.mxu0 %v311
    %929 = vmatpush.msra.mxu0 %v307
    %930 = vmatpush.msra.mxu0 %v303
    %931 = vmatpush.msra.mxu0 %v299
    %932 = vmatpush.msra.mxu0 %v295
    %933 = vmatpush.msra.mxu0 %v291
    %934 = vmatpush.msra.mxu0 %v287
    %935 = vmatpush.msra.mxu0 %v283
    %936 = vmatpush.msra.mxu0 %v279
    %937 = vmatpush.msra.mxu0 %v275
    %938 = vmatpush.msra.mxu0 %v271
    %939 = vmatmul.f32.gmra.mxu0 %v922
    %v940 = vpop.f32.mrf.mxu0
    %v941 = vadd.f32 0.0, %v940
    %942 = vdwg.mxu0
    %943 = vmatpush.msra.mxu0 %v332
    %944 = vmatpush.msra.mxu0 %v328
    %945 = vmatpush.msra.mxu0 %v324
    %946 = vmatpush.msra.mxu0 %v320
    %947 = vmatpush.msra.mxu0 %v316
    %948 = vmatpush.msra.mxu0 %v312
    %949 = vmatpush.msra.mxu0 %v308
    %950 = vmatpush.msra.mxu0 %v304
    %951 = vmatpush.msra.mxu0 %v300
    %952 = vmatpush.msra.mxu0 %v296
    %953 = vmatpush.msra.mxu0 %v292
    %954 = vmatpush.msra.mxu0 %v288
    %955 = vmatpush.msra.mxu0 %v284
    %956 = vmatpush.msra.mxu0 %v280
    %957 = vmatpush.msra.mxu0 %v276
    %958 = vmatpush.msra.mxu0 %v272
    %959 = vmatmul.f32.gmra.mxu0 %v922
    %v960 = vpop.f32.mrf.mxu0
    %v961 = vadd.f32 0.0, %v960
    %962 = vdwg.mxu0
    %963 = vmatpush.msra.mxu0 %v333
    %964 = vmatpush.msra.mxu0 %v329
    %965 = vmatpush.msra.mxu0 %v325
    %966 = vmatpush.msra.mxu0 %v321
    %967 = vmatpush.msra.mxu0 %v317
    %968 = vmatpush.msra.mxu0 %v313
    %969 = vmatpush.msra.mxu0 %v309
    %970 = vmatpush.msra.mxu0 %v305
    %971 = vmatpush.msra.mxu0 %v301
    %972 = vmatpush.msra.mxu0 %v297
    %973 = vmatpush.msra.mxu0 %v293
    %974 = vmatpush.msra.mxu0 %v289
    %975 = vmatpush.msra.mxu0 %v285
    %976 = vmatpush.msra.mxu0 %v281
    %977 = vmatpush.msra.mxu0 %v277
    %978 = vmatpush.msra.mxu0 %v273
    %979 = vmatmul.f32.gmra.mxu0 %v922
    %v980 = vpop.f32.mrf.mxu0
    %v981 = vadd.f32 0.0, %v980
    %982 = vdwg.mxu0
    %983 = vmatpush.msra.mxu0 %v334
    %984 = vmatpush.msra.mxu0 %v330
    %985 = vmatpush.msra.mxu0 %v326
    %986 = vmatpush.msra.mxu0 %v322
    %987 = vmatpush.msra.mxu0 %v318
    %988 = vmatpush.msra.mxu0 %v314
    %989 = vmatpush.msra.mxu0 %v310
    %990 = vmatpush.msra.mxu0 %v306
    %991 = vmatpush.msra.mxu0 %v302
    %992 = vmatpush.msra.mxu0 %v298
    %993 = vmatpush.msra.mxu0 %v294
    %994 = vmatpush.msra.mxu0 %v290
    %995 = vmatpush.msra.mxu0 %v286
    %996 = vmatpush.msra.mxu0 %v282
    %997 = vmatpush.msra.mxu0 %v278
    %998 = vmatpush.msra.mxu0 %v274
    %999 = vmatmul.f32.gmra.mxu0 %v922
    %v1000 = vpop.f32.mrf.mxu0
    %v1001 = vadd.f32 0.0, %v1000
    %1002 = vdwg.mxu0
    %v1003 = vadd.f32 %v137, %v941
    %v1004 = vadd.f32 %v178, %v961
    %v1005 = vadd.f32 %v219, %v981
    %v1006 = vadd.f32 %v260, %v1001
    %v1007 = vxor.u32 %v1003, 2147483648
    %v1008 = vxor.u32 %v1004, 2147483648
    %v1009 = vxor.u32 %v1005, 2147483648
    %v1010 = vmul.f32 %v1007, 1.442695
    %v1011 = vpow.pop %v1010
    %v1012 = vmul.f32 %v1008, 1.442695
    %v1013 = vpow.pop %v1012
    %v1014 = vmul.f32 %v1009, 1.442695
    %v1015 = vpow.pop %v1014
    %v1016 = vadd.f32 %v1011, 1.0
    %v1017 = vadd.f32 %v1013, 1.0
    %v1018 = vadd.f32 %v1015, 1.0
    %v1019 = vrcp.pop %v1016
    %v1020 = vmul.f32 %v1016, %v1019
    %v1021 = vsub.f32 1.0, %v1020
    %v1022 = vmul.f32 %v1019, %v1021
    %v1023 = vadd.f32 %v1019, %v1022
    %vm1024 = vweird.f32 %v1016
    %vm1025 = vweird.f32 %v1019
    %vm1026 = vmor %vm1024, %vm1025
    %v1027 = vsel %vm1026, %v1019, %v1023
    %v1028 = vand.u32 2147483647, %v1016
    %vm1029 = vcmp.eq.f32.partialorder %v1028, 8.507059e+37
    %v1030 = vand.u32 %v1016, 2147483648
    %v1031 = vor.u32 1.1754944e-38, %v1030
    %v1032 = vsel %vm1029, %v1031, %v1027
    %v1033 = vmul.f32 1.0, %v1032
    %v1034 = vrcp.pop %v1017
    %v1035 = vmul.f32 %v1017, %v1034
    %v1036 = vsub.f32 1.0, %v1035
    %v1037 = vmul.f32 %v1034, %v1036
    %v1038 = vadd.f32 %v1034, %v1037
    %vm1039 = vweird.f32 %v1017
    %vm1040 = vweird.f32 %v1034
    %vm1041 = vmor %vm1039, %vm1040
    %v1042 = vsel %vm1041, %v1034, %v1038
    %v1043 = vand.u32 2147483647, %v1017
    %vm1044 = vcmp.eq.f32.partialorder %v1043, 8.507059e+37
    %v1045 = vand.u32 %v1017, 2147483648
    %v1046 = vor.u32 1.1754944e-38, %v1045
    %v1047 = vsel %vm1044, %v1046, %v1042
    %v1048 = vmul.f32 1.0, %v1047
    %v1049 = vrcp.pop %v1018
    %v1050 = vmul.f32 %v1018, %v1049
    %v1051 = vsub.f32 1.0, %v1050
    %v1052 = vmul.f32 %v1049, %v1051
    %v1053 = vadd.f32 %v1049, %v1052
    %vm1054 = vweird.f32 %v1018
    %vm1055 = vweird.f32 %v1049
    %vm1056 = vmor %vm1054, %vm1055
    %v1057 = vsel %vm1056, %v1049, %v1053
    %v1058 = vand.u32 2147483647, %v1018
    %vm1059 = vcmp.eq.f32.partialorder %v1058, 8.507059e+37
    %v1060 = vand.u32 %v1018, 2147483648
    %v1061 = vor.u32 1.1754944e-38, %v1060
    %v1062 = vsel %vm1059, %v1061, %v1057
    %v1063 = vmul.f32 1.0, %v1062
    %v1064 = vtanh.pop %v1006
    %v1065 = vmul.f32 %v1048, %v920
    %v1066 = vmul.f32 %v1033, %v1064
    %v1067 = vadd.f32 %v1065, %v1066
    %v1068 = vtanh.pop %v1067
    %v1069 = vmul.f32 %v1063, %v1068
    %1070 = vmatpush.msra.mxu0 %v331
    %1071 = vmatpush.msra.mxu0 %v327
    %1072 = vmatpush.msra.mxu0 %v323
    %1073 = vmatpush.msra.mxu0 %v319
    %1074 = vmatpush.msra.mxu0 %v315
    %1075 = vmatpush.msra.mxu0 %v311
    %1076 = vmatpush.msra.mxu0 %v307
    %1077 = vmatpush.msra.mxu0 %v303
    %1078 = vmatpush.msra.mxu0 %v299
    %1079 = vmatpush.msra.mxu0 %v295
    %1080 = vmatpush.msra.mxu0 %v291
    %1081 = vmatpush.msra.mxu0 %v287
    %1082 = vmatpush.msra.mxu0 %v283
    %1083 = vmatpush.msra.mxu0 %v279
    %1084 = vmatpush.msra.mxu0 %v275
    %1085 = vmatpush.msra.mxu0 %v271
    %1086 = vmatmul.f32.gmra.mxu0 %v1069
    %v1087 = vpop.f32.mrf.mxu0
    %v1088 = vadd.f32 0.0, %v1087
    %1089 = vdwg.mxu0
    %1090 = vmatpush.msra.mxu0 %v332
    %1091 = vmatpush.msra.mxu0 %v328
    %1092 = vmatpush.msra.mxu0 %v324
    %1093 = vmatpush.msra.mxu0 %v320
    %1094 = vmatpush.msra.mxu0 %v316
    %1095 = vmatpush.msra.mxu0 %v312
    %1096 = vmatpush.msra.mxu0 %v308
    %1097 = vmatpush.msra.mxu0 %v304
    %1098 = vmatpush.msra.mxu0 %v300
    %1099 = vmatpush.msra.mxu0 %v296
    %1100 = vmatpush.msra.mxu0 %v292
    %1101 = vmatpush.msra.mxu0 %v288
    %1102 = vmatpush.msra.mxu0 %v284
    %1103 = vmatpush.msra.mxu0 %v280
    %1104 = vmatpush.msra.mxu0 %v276
    %1105 = vmatpush.msra.mxu0 %v272
    %1106 = vmatmul.f32.gmra.mxu0 %v1069
    %v1107 = vpop.f32.mrf.mxu0
    %v1108 = vadd.f32 0.0, %v1107
    %1109 = vdwg.mxu0
    %1110 = vmatpush.msra.mxu0 %v333
    %1111 = vmatpush.msra.mxu0 %v329
    %1112 = vmatpush.msra.mxu0 %v325
    %1113 = vmatpush.msra.mxu0 %v321
    %1114 = vmatpush.msra.mxu0 %v317
    %1115 = vmatpush.msra.mxu0 %v313
    %1116 = vmatpush.msra.mxu0 %v309
    %1117 = vmatpush.msra.mxu0 %v305
    %1118 = vmatpush.msra.mxu0 %v301
    %1119 = vmatpush.msra.mxu0 %v297
    %1120 = vmatpush.msra.mxu0 %v293
    %1121 = vmatpush.msra.mxu0 %v289
    %1122 = vmatpush.msra.mxu0 %v285
    %1123 = vmatpush.msra.mxu0 %v281
    %1124 = vmatpush.msra.mxu0 %v277
    %1125 = vmatpush.msra.mxu0 %v273
    %1126 = vmatmul.f32.gmra.mxu0 %v1069
    %v1127 = vpop.f32.mrf.mxu0
    %v1128 = vadd.f32 0.0, %v1127
    %1129 = vdwg.mxu0
    %1130 = vmatpush.msra.mxu0 %v334
    %1131 = vmatpush.msra.mxu0 %v330
    %1132 = vmatpush.msra.mxu0 %v326
    %1133 = vmatpush.msra.mxu0 %v322
    %1134 = vmatpush.msra.mxu0 %v318
    %1135 = vmatpush.msra.mxu0 %v314
    %1136 = vmatpush.msra.mxu0 %v310
    %1137 = vmatpush.msra.mxu0 %v306
    %1138 = vmatpush.msra.mxu0 %v302
    %1139 = vmatpush.msra.mxu0 %v298
    %1140 = vmatpush.msra.mxu0 %v294
    %1141 = vmatpush.msra.mxu0 %v290
    %1142 = vmatpush.msra.mxu0 %v286
    %1143 = vmatpush.msra.mxu0 %v282
    %1144 = vmatpush.msra.mxu0 %v278
    %1145 = vmatpush.msra.mxu0 %v274
    %1146 = vmatmul.f32.gmra.mxu0 %v1069
    %v1147 = vpop.f32.mrf.mxu0
    %v1148 = vadd.f32 0.0, %v1147
    %1149 = vdwg.mxu0
    %v1150 = vadd.f32 %v140, %v1088
    %v1151 = vadd.f32 %v181, %v1108
    %v1152 = vadd.f32 %v222, %v1128
    %v1153 = vadd.f32 %v263, %v1148
    %v1154 = vxor.u32 %v1150, 2147483648
    %v1155 = vxor.u32 %v1151, 2147483648
    %v1156 = vxor.u32 %v1152, 2147483648
    %v1157 = vmul.f32 %v1154, 1.442695
    %v1158 = vpow.pop %v1157
    %v1159 = vmul.f32 %v1155, 1.442695
    %v1160 = vpow.pop %v1159
    %v1161 = vmul.f32 %v1156, 1.442695
    %v1162 = vpow.pop %v1161
    %v1163 = vadd.f32 %v1158, 1.0
    %v1164 = vadd.f32 %v1160, 1.0
    %v1165 = vadd.f32 %v1162, 1.0
    %v1166 = vrcp.pop %v1163
    %v1167 = vmul.f32 %v1163, %v1166
    %v1168 = vsub.f32 1.0, %v1167
    %v1169 = vmul.f32 %v1166, %v1168
    %v1170 = vadd.f32 %v1166, %v1169
    %vm1171 = vweird.f32 %v1163
    %vm1172 = vweird.f32 %v1166
    %vm1173 = vmor %vm1171, %vm1172
    %v1174 = vsel %vm1173, %v1166, %v1170
    %v1175 = vand.u32 2147483647, %v1163
    %vm1176 = vcmp.eq.f32.partialorder %v1175, 8.507059e+37
    %v1177 = vand.u32 %v1163, 2147483648
    %v1178 = vor.u32 1.1754944e-38, %v1177
    %v1179 = vsel %vm1176, %v1178, %v1174
    %v1180 = vmul.f32 1.0, %v1179
    %v1181 = vrcp.pop %v1164
    %v1182 = vmul.f32 %v1164, %v1181
    %v1183 = vsub.f32 1.0, %v1182
    %v1184 = vmul.f32 %v1181, %v1183
    %v1185 = vadd.f32 %v1181, %v1184
    %vm1186 = vweird.f32 %v1164
    %vm1187 = vweird.f32 %v1181
    %vm1188 = vmor %vm1186, %vm1187
    %v1189 = vsel %vm1188, %v1181, %v1185
    %v1190 = vand.u32 2147483647, %v1164
    %vm1191 = vcmp.eq.f32.partialorder %v1190, 8.507059e+37
    %v1192 = vand.u32 %v1164, 2147483648
    %v1193 = vor.u32 1.1754944e-38, %v1192
    %v1194 = vsel %vm1191, %v1193, %v1189
    %v1195 = vmul.f32 1.0, %v1194
    %v1196 = vrcp.pop %v1165
    %v1197 = vmul.f32 %v1165, %v1196
    %v1198 = vsub.f32 1.0, %v1197
    %v1199 = vmul.f32 %v1196, %v1198
    %v1200 = vadd.f32 %v1196, %v1199
    %vm1201 = vweird.f32 %v1165
    %vm1202 = vweird.f32 %v1196
    %vm1203 = vmor %vm1201, %vm1202
    %v1204 = vsel %vm1203, %v1196, %v1200
    %v1205 = vand.u32 2147483647, %v1165
    %vm1206 = vcmp.eq.f32.partialorder %v1205, 8.507059e+37
    %v1207 = vand.u32 %v1165, 2147483648
    %v1208 = vor.u32 1.1754944e-38, %v1207
    %v1209 = vsel %vm1206, %v1208, %v1204
    %v1210 = vmul.f32 1.0, %v1209
    %v1211 = vtanh.pop %v1153
    %v1212 = vmul.f32 %v1195, %v1067
    %v1213 = vmul.f32 %v1180, %v1211
    %v1214 = vadd.f32 %v1212, %v1213
    %v1215 = vtanh.pop %v1214
    %v1216 = vmul.f32 %v1210, %v1215
    %1217 = vmatpush.msra.mxu0 %v331
    %1218 = vmatpush.msra.mxu0 %v327
    %1219 = vmatpush.msra.mxu0 %v323
    %1220 = vmatpush.msra.mxu0 %v319
    %1221 = vmatpush.msra.mxu0 %v315
    %1222 = vmatpush.msra.mxu0 %v311
    %1223 = vmatpush.msra.mxu0 %v307
    %1224 = vmatpush.msra.mxu0 %v303
    %1225 = vmatpush.msra.mxu0 %v299
    %1226 = vmatpush.msra.mxu0 %v295
    %1227 = vmatpush.msra.mxu0 %v291
    %1228 = vmatpush.msra.mxu0 %v287
    %1229 = vmatpush.msra.mxu0 %v283
    %1230 = vmatpush.msra.mxu0 %v279
    %1231 = vmatpush.msra.mxu0 %v275
    %1232 = vmatpush.msra.mxu0 %v271
    %1233 = vmatmul.f32.gmra.mxu0 %v1216
    %v1234 = vpop.f32.mrf.mxu0
    %v1235 = vadd.f32 0.0, %v1234
    %1236 = vdwg.mxu0
    %1237 = vmatpush.msra.mxu0 %v332
    %1238 = vmatpush.msra.mxu0 %v328
    %1239 = vmatpush.msra.mxu0 %v324
    %1240 = vmatpush.msra.mxu0 %v320
    %1241 = vmatpush.msra.mxu0 %v316
    %1242 = vmatpush.msra.mxu0 %v312
    %1243 = vmatpush.msra.mxu0 %v308
    %1244 = vmatpush.msra.mxu0 %v304
    %1245 = vmatpush.msra.mxu0 %v300
    %1246 = vmatpush.msra.mxu0 %v296
    %1247 = vmatpush.msra.mxu0 %v292
    %1248 = vmatpush.msra.mxu0 %v288
    %1249 = vmatpush.msra.mxu0 %v284
    %1250 = vmatpush.msra.mxu0 %v280
    %1251 = vmatpush.msra.mxu0 %v276
    %1252 = vmatpush.msra.mxu0 %v272
    %1253 = vmatmul.f32.gmra.mxu0 %v1216
    %v1254 = vpop.f32.mrf.mxu0
    %v1255 = vadd.f32 0.0, %v1254
    %1256 = vdwg.mxu0
    %1257 = vmatpush.msra.mxu0 %v333
    %1258 = vmatpush.msra.mxu0 %v329
    %1259 = vmatpush.msra.mxu0 %v325
    %1260 = vmatpush.msra.mxu0 %v321
    %1261 = vmatpush.msra.mxu0 %v317
    %1262 = vmatpush.msra.mxu0 %v313
    %1263 = vmatpush.msra.mxu0 %v309
    %1264 = vmatpush.msra.mxu0 %v305
    %1265 = vmatpush.msra.mxu0 %v301
    %1266 = vmatpush.msra.mxu0 %v297
    %1267 = vmatpush.msra.mxu0 %v293
    %1268 = vmatpush.msra.mxu0 %v289
    %1269 = vmatpush.msra.mxu0 %v285
    %1270 = vmatpush.msra.mxu0 %v281
    %1271 = vmatpush.msra.mxu0 %v277
    %1272 = vmatpush.msra.mxu0 %v273
    %1273 = vmatmul.f32.gmra.mxu0 %v1216
    %v1274 = vpop.f32.mrf.mxu0
    %v1275 = vadd.f32 0.0, %v1274
    %1276 = vdwg.mxu0
    %1277 = vmatpush.msra.mxu0 %v334
    %1278 = vmatpush.msra.mxu0 %v330
    %1279 = vmatpush.msra.mxu0 %v326
    %1280 = vmatpush.msra.mxu0 %v322
    %1281 = vmatpush.msra.mxu0 %v318
    %1282 = vmatpush.msra.mxu0 %v314
    %1283 = vmatpush.msra.mxu0 %v310
    %1284 = vmatpush.msra.mxu0 %v306
    %1285 = vmatpush.msra.mxu0 %v302
    %1286 = vmatpush.msra.mxu0 %v298
    %1287 = vmatpush.msra.mxu0 %v294
    %1288 = vmatpush.msra.mxu0 %v290
    %1289 = vmatpush.msra.mxu0 %v286
    %1290 = vmatpush.msra.mxu0 %v282
    %1291 = vmatpush.msra.mxu0 %v278
    %1292 = vmatpush.msra.mxu0 %v274
    %1293 = vmatmul.f32.gmra.mxu0 %v1216
    %v1294 = vpop.f32.mrf.mxu0
    %v1295 = vadd.f32 0.0, %v1294
    %1296 = vdwg.mxu0
    %v1297 = vadd.f32 %v143, %v1235
    %v1298 = vadd.f32 %v184, %v1255
    %v1299 = vadd.f32 %v225, %v1275
    %v1300 = vadd.f32 %v266, %v1295
    %v1301 = vxor.u32 %v1297, 2147483648
    %v1302 = vxor.u32 %v1298, 2147483648
    %v1303 = vxor.u32 %v1299, 2147483648
    %v1304 = vmul.f32 %v1301, 1.442695
    %v1305 = vpow.pop %v1304
    %v1306 = vmul.f32 %v1302, 1.442695
    %v1307 = vpow.pop %v1306
    %v1308 = vmul.f32 %v1303, 1.442695
    %v1309 = vpow.pop %v1308
    %v1310 = vadd.f32 %v1305, 1.0
    %v1311 = vadd.f32 %v1307, 1.0
    %v1312 = vadd.f32 %v1309, 1.0
    %v1313 = vrcp.pop %v1310
    %v1314 = vmul.f32 %v1310, %v1313
    %v1315 = vsub.f32 1.0, %v1314
    %v1316 = vmul.f32 %v1313, %v1315
    %v1317 = vadd.f32 %v1313, %v1316
    %vm1318 = vweird.f32 %v1310
    %vm1319 = vweird.f32 %v1313
    %vm1320 = vmor %vm1318, %vm1319
    %v1321 = vsel %vm1320, %v1313, %v1317
    %v1322 = vand.u32 2147483647, %v1310
    %vm1323 = vcmp.eq.f32.partialorder %v1322, 8.507059e+37
    %v1324 = vand.u32 %v1310, 2147483648
    %v1325 = vor.u32 1.1754944e-38, %v1324
    %v1326 = vsel %vm1323, %v1325, %v1321
    %v1327 = vmul.f32 1.0, %v1326
    %v1328 = vrcp.pop %v1311
    %v1329 = vmul.f32 %v1311, %v1328
    %v1330 = vsub.f32 1.0, %v1329
    %v1331 = vmul.f32 %v1328, %v1330
    %v1332 = vadd.f32 %v1328, %v1331
    %vm1333 = vweird.f32 %v1311
    %vm1334 = vweird.f32 %v1328
    %vm1335 = vmor %vm1333, %vm1334
    %v1336 = vsel %vm1335, %v1328, %v1332
    %v1337 = vand.u32 2147483647, %v1311
    %vm1338 = vcmp.eq.f32.partialorder %v1337, 8.507059e+37
    %v1339 = vand.u32 %v1311, 2147483648
    %v1340 = vor.u32 1.1754944e-38, %v1339
    %v1341 = vsel %vm1338, %v1340, %v1336
    %v1342 = vmul.f32 1.0, %v1341
    %v1343 = vrcp.pop %v1312
    %v1344 = vmul.f32 %v1312, %v1343
    %v1345 = vsub.f32 1.0, %v1344
    %v1346 = vmul.f32 %v1343, %v1345
    %v1347 = vadd.f32 %v1343, %v1346
    %vm1348 = vweird.f32 %v1312
    %vm1349 = vweird.f32 %v1343
    %vm1350 = vmor %vm1348, %vm1349
    %v1351 = vsel %vm1350, %v1343, %v1347
    %v1352 = vand.u32 2147483647, %v1312
    %vm1353 = vcmp.eq.f32.partialorder %v1352, 8.507059e+37
    %v1354 = vand.u32 %v1312, 2147483648
    %v1355 = vor.u32 1.1754944e-38, %v1354
    %v1356 = vsel %vm1353, %v1355, %v1351
    %v1357 = vmul.f32 1.0, %v1356
    %v1358 = vtanh.pop %v1300
    %v1359 = vmul.f32 %v1342, %v1214
    %v1360 = vmul.f32 %v1327, %v1358
    %v1361 = vadd.f32 %v1359, %v1360
    %v1362 = vtanh.pop %v1361
    %v1363 = vmul.f32 %v1357, %v1362
    %1364 = vmatpush.msra.mxu0 %v331
    %1365 = vmatpush.msra.mxu0 %v327
    %1366 = vmatpush.msra.mxu0 %v323
    %1367 = vmatpush.msra.mxu0 %v319
    %1368 = vmatpush.msra.mxu0 %v315
    %1369 = vmatpush.msra.mxu0 %v311
    %1370 = vmatpush.msra.mxu0 %v307
    %1371 = vmatpush.msra.mxu0 %v303
    %1372 = vmatpush.msra.mxu0 %v299
    %1373 = vmatpush.msra.mxu0 %v295
    %1374 = vmatpush.msra.mxu0 %v291
    %1375 = vmatpush.msra.mxu0 %v287
    %1376 = vmatpush.msra.mxu0 %v283
    %1377 = vmatpush.msra.mxu0 %v279
    %1378 = vmatpush.msra.mxu0 %v275
    %1379 = vmatpush.msra.mxu0 %v271
    %1380 = vmatmul.f32.gmra.mxu0 %v1363
    %v1381 = vpop.f32.mrf.mxu0
    %v1382 = vadd.f32 0.0, %v1381
    %1383 = vdwg.mxu0
    %1384 = vmatpush.msra.mxu0 %v332
    %1385 = vmatpush.msra.mxu0 %v328
    %1386 = vmatpush.msra.mxu0 %v324
    %1387 = vmatpush.msra.mxu0 %v320
    %1388 = vmatpush.msra.mxu0 %v316
    %1389 = vmatpush.msra.mxu0 %v312
    %1390 = vmatpush.msra.mxu0 %v308
    %1391 = vmatpush.msra.mxu0 %v304
    %1392 = vmatpush.msra.mxu0 %v300
    %1393 = vmatpush.msra.mxu0 %v296
    %1394 = vmatpush.msra.mxu0 %v292
    %1395 = vmatpush.msra.mxu0 %v288
    %1396 = vmatpush.msra.mxu0 %v284
    %1397 = vmatpush.msra.mxu0 %v280
    %1398 = vmatpush.msra.mxu0 %v276
    %1399 = vmatpush.msra.mxu0 %v272
    %1400 = vmatmul.f32.gmra.mxu0 %v1363
    %v1401 = vpop.f32.mrf.mxu0
    %v1402 = vadd.f32 0.0, %v1401
    %1403 = vdwg.mxu0
    %1404 = vmatpush.msra.mxu0 %v333
    %1405 = vmatpush.msra.mxu0 %v329
    %1406 = vmatpush.msra.mxu0 %v325
    %1407 = vmatpush.msra.mxu0 %v321
    %1408 = vmatpush.msra.mxu0 %v317
    %1409 = vmatpush.msra.mxu0 %v313
    %1410 = vmatpush.msra.mxu0 %v309
    %1411 = vmatpush.msra.mxu0 %v305
    %1412 = vmatpush.msra.mxu0 %v301
    %1413 = vmatpush.msra.mxu0 %v297
    %1414 = vmatpush.msra.mxu0 %v293
    %1415 = vmatpush.msra.mxu0 %v289
    %1416 = vmatpush.msra.mxu0 %v285
    %1417 = vmatpush.msra.mxu0 %v281
    %1418 = vmatpush.msra.mxu0 %v277
    %1419 = vmatpush.msra.mxu0 %v273
    %1420 = vmatmul.f32.gmra.mxu0 %v1363
    %v1421 = vpop.f32.mrf.mxu0
    %v1422 = vadd.f32 0.0, %v1421
    %1423 = vdwg.mxu0
    %1424 = vmatpush.msra.mxu0 %v334
    %1425 = vmatpush.msra.mxu0 %v330
    %1426 = vmatpush.msra.mxu0 %v326
    %1427 = vmatpush.msra.mxu0 %v322
    %1428 = vmatpush.msra.mxu0 %v318
    %1429 = vmatpush.msra.mxu0 %v314
    %1430 = vmatpush.msra.mxu0 %v310
    %1431 = vmatpush.msra.mxu0 %v306
    %1432 = vmatpush.msra.mxu0 %v302
    %1433 = vmatpush.msra.mxu0 %v298
    %1434 = vmatpush.msra.mxu0 %v294
    %1435 = vmatpush.msra.mxu0 %v290
    %1436 = vmatpush.msra.mxu0 %v286
    %1437 = vmatpush.msra.mxu0 %v282
    %1438 = vmatpush.msra.mxu0 %v278
    %1439 = vmatpush.msra.mxu0 %v274
    %1440 = vmatmul.f32.gmra.mxu0 %v1363
    %v1441 = vpop.f32.mrf.mxu0
    %v1442 = vadd.f32 0.0, %v1441
    %1443 = vdwg.mxu0
    %v1444 = vadd.f32 %v146, %v1382
    %v1445 = vadd.f32 %v187, %v1402
    %v1446 = vadd.f32 %v228, %v1422
    %v1447 = vadd.f32 %v269, %v1442
    %v1448 = vxor.u32 %v1444, 2147483648
    %v1449 = vxor.u32 %v1445, 2147483648
    %v1450 = vxor.u32 %v1446, 2147483648
    %v1451 = vmul.f32 %v1448, 1.442695
    %v1452 = vpow.pop %v1451
    %v1453 = vmul.f32 %v1449, 1.442695
    %v1454 = vpow.pop %v1453
    %v1455 = vmul.f32 %v1450, 1.442695
    %v1456 = vpow.pop %v1455
    %v1457 = vadd.f32 %v1452, 1.0
    %v1458 = vadd.f32 %v1454, 1.0
    %v1459 = vadd.f32 %v1456, 1.0
    %v1460 = vrcp.pop %v1457
    %v1461 = vmul.f32 %v1457, %v1460
    %v1462 = vsub.f32 1.0, %v1461
    %v1463 = vmul.f32 %v1460, %v1462
    %v1464 = vadd.f32 %v1460, %v1463
    %vm1465 = vweird.f32 %v1457
    %vm1466 = vweird.f32 %v1460
    %vm1467 = vmor %vm1465, %vm1466
    %v1468 = vsel %vm1467, %v1460, %v1464
    %v1469 = vand.u32 2147483647, %v1457
    %vm1470 = vcmp.eq.f32.partialorder %v1469, 8.507059e+37
    %v1471 = vand.u32 %v1457, 2147483648
    %v1472 = vor.u32 1.1754944e-38, %v1471
    %v1473 = vsel %vm1470, %v1472, %v1468
    %v1474 = vmul.f32 1.0, %v1473
    %v1475 = vrcp.pop %v1458
    %v1476 = vmul.f32 %v1458, %v1475
    %v1477 = vsub.f32 1.0, %v1476
    %v1478 = vmul.f32 %v1475, %v1477
    %v1479 = vadd.f32 %v1475, %v1478
    %vm1480 = vweird.f32 %v1458
    %vm1481 = vweird.f32 %v1475
    %vm1482 = vmor %vm1480, %vm1481
    %v1483 = vsel %vm1482, %v1475, %v1479
    %v1484 = vand.u32 2147483647, %v1458
    %vm1485 = vcmp.eq.f32.partialorder %v1484, 8.507059e+37
    %v1486 = vand.u32 %v1458, 2147483648
    %v1487 = vor.u32 1.1754944e-38, %v1486
    %v1488 = vsel %vm1485, %v1487, %v1483
    %v1489 = vmul.f32 1.0, %v1488
    %v1490 = vrcp.pop %v1459
    %v1491 = vmul.f32 %v1459, %v1490
    %v1492 = vsub.f32 1.0, %v1491
    %v1493 = vmul.f32 %v1490, %v1492
    %v1494 = vadd.f32 %v1490, %v1493
    %vm1495 = vweird.f32 %v1459
    %vm1496 = vweird.f32 %v1490
    %vm1497 = vmor %vm1495, %vm1496
    %v1498 = vsel %vm1497, %v1490, %v1494
    %v1499 = vand.u32 2147483647, %v1459
    %vm1500 = vcmp.eq.f32.partialorder %v1499, 8.507059e+37
    %v1501 = vand.u32 %v1459, 2147483648
    %v1502 = vor.u32 1.1754944e-38, %v1501
    %v1503 = vsel %vm1500, %v1502, %v1498
    %v1504 = vmul.f32 1.0, %v1503
    %v1505 = vtanh.pop %v1447
    %v1506 = vmul.f32 %v1489, %v1361
    %v1507 = vmul.f32 %v1474, %v1505
    %v1508 = vadd.f32 %v1506, %v1507
    %v1509 = vtanh.pop %v1508
    %v1510 = vmul.f32 %v1504, %v1509
    %v1511 = vld [vmem:[#allocation5] sm:$0xff]
    %v1512 = vld [vmem:[#allocation5 + $0x8] sm:$0xff]
    %v1513 = vld [vmem:[#allocation5 + $0x10] sm:$0xff]
    %v1514 = vld [vmem:[#allocation5 + $0x18] sm:$0xff]
    %v1515 = vld [vmem:[#allocation5 + $0x20] sm:$0xff]
    %v1516 = vld [vmem:[#allocation5 + $0x28] sm:$0xff]
    %v1517 = vld [vmem:[#allocation5 + $0x30] sm:$0xff]
    %v1518 = vld [vmem:[#allocation5 + $0x38] sm:$0xff]
    %v1519 = vld [vmem:[#allocation5 + $0x40] sm:$0xff]
    %v1520 = vld [vmem:[#allocation5 + $0x48] sm:$0xff]
    %v1521 = vld [vmem:[#allocation5 + $0x50] sm:$0xff]
    %v1522 = vld [vmem:[#allocation5 + $0x58] sm:$0xff]
    %v1523 = vld [vmem:[#allocation5 + $0x60] sm:$0xff]
    %v1524 = vld [vmem:[#allocation5 + $0x68] sm:$0xff]
    %v1525 = vld [vmem:[#allocation5 + $0x70] sm:$0xff]
    %v1526 = vld [vmem:[#allocation5 + $0x78] sm:$0xff]
    %v1527 = vld [vmem:[%s5] sm:$0x1]
    %v1529 = vperm.slane %v1527, 0
    %1531 = vmatpush.msra.mxu0 %v1526
    %1532 = vmatpush.msra.mxu0 %v1525
    %1533 = vmatpush.msra.mxu0 %v1524
    %1534 = vmatpush.msra.mxu0 %v1523
    %1535 = vmatpush.msra.mxu0 %v1522
    %1536 = vmatpush.msra.mxu0 %v1521
    %1537 = vmatpush.msra.mxu0 %v1520
    %1538 = vmatpush.msra.mxu0 %v1519
    %1539 = vmatpush.msra.mxu0 %v1518
    %1540 = vmatpush.msra.mxu0 %v1517
    %1541 = vmatpush.msra.mxu0 %v1516
    %1542 = vmatpush.msra.mxu0 %v1515
    %1543 = vmatpush.msra.mxu0 %v1514
    %1544 = vmatpush.msra.mxu0 %v1513
    %1545 = vmatpush.msra.mxu0 %v1512
    %1546 = vmatpush.msra.mxu0 %v1511
    %1547 = vmatmul.f32.gmra.mxu0 %v1510
    %v1548 = vpop.f32.mrf.mxu0
    %v1549 = vadd.f32 %v1529, %v1548
    %1550 = vdwg.mxu0
    %1551 = vst [vmem:[#allocation7] sm:$0xff] %v1549
    // Predicated region
    $region34: #{tpu_custom_call.1} parent=1 // pred_check
      _
    $region35: #{tpu_custom_call.1} parent=1 // pred_check_branch
      %1553 = sbr.rel (0) target = $region37
    $region36: #{tpu_custom_call.1} parent=1 // pred_region
      %1555 = vsyncadd [#allocation4], 0
      %s1557 = sshll.u32 [#allocation7], 4
      %s1558 = int_to_ptr.vmem [resolvable:$true] %s1557
      %s1559 = sshll.u32 %s6, 4
      %s1560 = int_to_ptr.hbm [resolvable:$true] %s1559
      %1562 = dma.vmem_to_hbm [thread:$0]  %s1558, 128, %s1560, [#allocation4]
    $region37: #{tpu_custom_call.1} parent=1 // pred_fallthru
      _
    // Predicated region
    $region38: #{tpu_custom_call.1} parent=1 // pred_check
      _
    $region39: #{tpu_custom_call.1} parent=1 // pred_check_branch
      %1564 = sbr.rel (0) target = $region41
    $region40: #{tpu_custom_call.1} parent=1 // pred_region
      %1566 = dma.done [#allocation4], 128
    $region41: #{tpu_custom_call.1} parent=1 // pred_fallthru
      _
    %1567 = vsyncpa [#allocation3], 1
    %1568 = vsyncpa [#allocation6], 1
    %1569 = vsyncpa [#allocation4], 1

</llo_original>
